<compile_context>
chip_gen: v7x
topology: tpu7x:2x2x1
jax: 0.10.0
libtpu: 0.0.40
codegen_flags: <defaults>
</compile_context>

<pallas_src>
import jax
import jax.numpy as jnp
from jax.experimental import pallas as pl
from jax.experimental.pallas import tpu as pltpu


# Budget (in f32 elements) for each (tile_i, F_out, tile_j) gate temporary.
_TEMP_ELEM_BUDGET = 1 << 20  # ~4 MiB per temporary


def _gated_graph_conv_kernel(xu_ref, xa_ref, xbt_ref, xvt_ref, adj_ref,
                             o_ref, acc_ref):
    """One (batch, row-tile, neighbour-tile) grid step.

    Block shapes (leading batch-block dim of 1):
      xu_ref, xa_ref : (1, tile_i, F_out)   self / gate-i projections of rows i
      xbt_ref        : (1, F_out, tile_j)   (x @ B)^T for neighbour columns j
      xvt_ref        : (1, F_out, tile_j)   (x @ V)^T for neighbour columns j
      adj_ref        : (1, tile_i, tile_j)  adjacency tile
      o_ref          : (1, tile_i, F_out)
      acc_ref        : VMEM (tile_i, F_out) f32 accumulator across the j axis
    """
    j = pl.program_id(2)

    @pl.when(j == 0)
    def _():
        acc_ref[...] = jnp.zeros_like(acc_ref)

    # Fold the 0.5 factors of the tanh-form sigmoid into the small 2-D
    # operands so the big 3-D tensor only sees add / tanh / mul.
    half_xa = 0.5 * xa_ref[0]                         # (tile_i, F_out)
    half_xbt = 0.5 * xbt_ref[0]                       # (F_out, tile_j)
    half_xvt = 0.5 * xvt_ref[0]                       # (F_out, tile_j)
    adj = adj_ref[0].astype(jnp.float32)              # (tile_i, tile_j)

    # sigmoid(z) = 0.5 * tanh(0.5 * z) + 0.5  -> single EUP transcendental.
    # Neighbour axis (tile_j) sits on lanes -> full vreg utilisation.
    zh = half_xa[:, :, None] + half_xbt[None, :, :]   # (tile_i, F_out, tile_j)
    gate2 = jnp.tanh(zh) + 1.0                        # = 2 * sigmoid(xa + xb)
    contrib = gate2 * half_xvt[None, :, :] * adj[:, None, :]
    acc_ref[...] += jnp.sum(contrib, axis=-1)         # (tile_i, F_out)

    @pl.when(j == pl.num_programs(2) - 1)
    def _():
        o_ref[0] = (xu_ref[0] + acc_ref[...]).astype(o_ref.dtype)


def _largest_aligned_divisor(n, unit, cap):
    """Largest multiple of `unit` that divides `n` and is <= cap; else n."""
    if n % unit != 0:
        # Ragged axis: fall back to the full extent (valid, but can blow VMEM
        # for very large ragged N; pad N to a multiple of 8/128 in that case).
        return n
    t = min(n, max(unit, cap - cap % unit))
    while t >= unit:
        if n % t == 0:
            return t
        t -= unit
    return n


def gated_graph_conv(adj, x, U, V, A_p, B_p, *, tile_i=None, tile_j=None):
    """Fused GatedGraphConv forward: adj (B,N,N), x (B,N,F_in) -> (B,N,F_out)."""
    Bt, N, F_in = x.shape
    F_out = U.shape[1]

    # --- Hoisted projections: one packed MXU matmul (wrapper-side XLA). -----
    W = jnp.concatenate([U, A_p, B_p, V], axis=1)            # (F_in, 4*F_out)
    proj = jnp.einsum("bnf,fg->bng",
                      x.astype(jnp.float32), W.astype(jnp.float32),
                      preferred_element_type=jnp.float32)    # (B, N, 4*F_out)
    xu = proj[..., 0 * F_out:1 * F_out]                      # (B, N, F_out)
    xa = proj[..., 1 * F_out:2 * F_out]                      # (B, N, F_out)
    # j-indexed projections go in lane-dense transposed layout (N on lanes).
    xbt = jnp.swapaxes(proj[..., 2 * F_out:3 * F_out], 1, 2)  # (B, F_out, N)
    xvt = jnp.swapaxes(proj[..., 3 * F_out:4 * F_out], 1, 2)  # (B, F_out, N)

    # --- Tile selection ------------------------------------------------------
    if tile_j is None:
        tile_j = _largest_aligned_divisor(N, 128, 512)       # lane-dim j tile
    if tile_i is None:
        cap_i = max(8, min(256, _TEMP_ELEM_BUDGET // max(1, F_out * tile_j)))
        tile_i = _largest_aligned_divisor(N, 8, cap_i)
    assert N % tile_i == 0 and N % tile_j == 0, "tiles must divide N"
    num_i, num_j = N // tile_i, N // tile_j

    # --- Advisory cost estimate ---------------------------------------------
    gate_elems = Bt * N * N * F_out
    cost = pl.CostEstimate(
        flops=6 * gate_elems,                    # add, +1, 2 muls, reduce, acc
        transcendentals=gate_elems,              # one tanh per gate element
        bytes_accessed=(adj.size * adj.dtype.itemsize
                        + 4 * Bt * N * F_out * 4              # xu, xa, xbt, xvt
                        + Bt * N * F_out * x.dtype.itemsize))  # output

    return pl.pallas_call(
        _gated_graph_conv_kernel,
        out_shape=jax.ShapeDtypeStruct((Bt, N, F_out), x.dtype),
        grid_spec=pltpu.PrefetchScalarGridSpec(
            num_scalar_prefetch=0,
            grid=(Bt, num_i, num_j),
            in_specs=[
                pl.BlockSpec((1, tile_i, F_out), lambda b, i, j: (b, i, 0)),   # x@U
                pl.BlockSpec((1, tile_i, F_out), lambda b, i, j: (b, i, 0)),   # x@A
                pl.BlockSpec((1, F_out, tile_j), lambda b, i, j: (b, 0, j)),   # (x@B)^T
                pl.BlockSpec((1, F_out, tile_j), lambda b, i, j: (b, 0, j)),   # (x@V)^T
                pl.BlockSpec((1, tile_i, tile_j), lambda b, i, j: (b, i, j)),  # adj
            ],
            out_specs=pl.BlockSpec((1, tile_i, F_out), lambda b, i, j: (b, i, 0)),
            scratch_shapes=[pltpu.VMEM((tile_i, F_out), jnp.float32)],
        ),
        compiler_params=pltpu.CompilerParams(
            dimension_semantics=("parallel", "parallel", "arbitrary"),
            vmem_limit_bytes=48 * 1024 * 1024),
        cost_estimate=cost,
    )(xu, xa, xbt, xvt, adj)


def _xavier_normal(key, shape, dtype=jnp.float32):
    fan_in, fan_out = shape
    std = (2.0 / (fan_in + fan_out)) ** 0.5
    return std * jax.random.normal(key, shape, dtype=dtype)


def _reference_forward(adj, x, U, V, A_p, B_p):
    """Pure-JAX mirror of the PyTorch forward (for correctness checking)."""
    xa = x @ A_p            # (B, N, F_out)   A h_i
    xb = x @ B_p            # (B, N, F_out)   B h_j
    xv = x @ V              # (B, N, F_out)   V h_j
    xu = x @ U              # (B, N, F_out)   U x
    gates = jax.nn.sigmoid(xa[:, :, None, :] + xb[:, None, :, :]) * adj[..., None]
    nbrs = jnp.sum(gates * xv[:, None, :, :], axis=2)
    return xu + nbrs


if __name__ == "__main__":
    # Small shapes consistent with the module: B graphs, N nodes, feature dims.
    B, N = 2, 16
    in_features, out_features = 16, 32

    key = jax.random.PRNGKey(0)
    k_adj, k_x, k_u, k_v, k_a, k_b = jax.random.split(key, 6)

    # Weighted dense adjacency (any (B, N, N) matrix is valid for the forward).
    adj = jax.random.uniform(k_adj, (B, N, N), dtype=jnp.float32)
    x = jax.random.normal(k_x, (B, N, in_features), dtype=jnp.float32)

    # Deterministic xavier-normal parameter init (matches __init__ shapes).
    U = _xavier_normal(k_u, (in_features, out_features))
    V = _xavier_normal(k_v, (in_features, out_features))
    A_p = _xavier_normal(k_a, (in_features, out_features))
    B_p = _xavier_normal(k_b, (in_features, out_features))

    out = jax.jit(gated_graph_conv)(adj, x, U, V, A_p, B_p)
    out = jax.block_until_ready(out)

    ref = _reference_forward(adj, x, U, V, A_p, B_p)
    assert out.shape == (B, N, out_features)
    assert jnp.allclose(out, ref, atol=1e-4, rtol=1e-4), "mismatch vs reference"

    print("KERNEL_OK")
</pallas_src>

<mosaic_0001>
module attributes {stable_mosaic.version = 11 : i64} {
  func.func @_gated_graph_conv_kernel(%arg0: i32, %arg1: i32, %arg2: i32, %arg3: memref<1x16x32xf32, #tpu.memory_space<vmem>>, %arg4: memref<1x16x32xf32, #tpu.memory_space<vmem>>, %arg5: memref<1x32x16xf32, #tpu.memory_space<vmem>>, %arg6: memref<1x32x16xf32, #tpu.memory_space<vmem>>, %arg7: memref<1x16x16xf32, #tpu.memory_space<vmem>>, %arg8: memref<1x16x32xf32, #tpu.memory_space<vmem>>, %arg9: memref<16x32xf32, #tpu.memory_space<vmem>>) attributes {dimension_semantics = [#tpu.dimension_semantics<parallel>, #tpu.dimension_semantics<parallel>, #tpu.dimension_semantics<arbitrary>], iteration_bounds = array<i64: 2, 1, 1>, scalar_prefetch = 0 : i64, scratch_operands = 1 : i64, tpu.core_type = #tpu.core_type<tc>, window_params = [{transform_indices = @transform_0, window_bounds = array<i64: 1, 16, 32>}, {transform_indices = @transform_1, window_bounds = array<i64: 1, 16, 32>}, {transform_indices = @transform_2, window_bounds = array<i64: 1, 32, 16>}, {transform_indices = @transform_3, window_bounds = array<i64: 1, 32, 16>}, {transform_indices = @transform_4, window_bounds = array<i64: 1, 16, 16>}, {transform_indices = @transform_5, window_bounds = array<i64: 1, 16, 32>}]} {
    %c0_i32 = arith.constant 0 : i32
    %0 = arith.cmpi eq, %arg2, %c0_i32 : i32
    %1 = arith.extui %0 : i1 to i32
    %c0_i32_0 = arith.constant 0 : i32
    %2 = arith.cmpi ne, %1, %c0_i32_0 : i32
    scf.if %2 {
      %cst_22 = arith.constant 0.000000e+00 : f32
      %38 = vector.broadcast %cst_22 : f32 to vector<16x32xf32>
      %c0_23 = arith.constant 0 : index
      %c0_24 = arith.constant 0 : index
      %39 = vector.load %arg9[%c0_23, %c0_24] : memref<16x32xf32, #tpu.memory_space<vmem>>, vector<16x32xf32>
      tpu.vector_store %arg9[%c0_23, %c0_24], %38 {strides = array<i32>} : memref<16x32xf32, #tpu.memory_space<vmem>>, vector<16x32xf32>,
    } else {
    }
    %c0 = arith.constant 0 : index
    %c0_1 = arith.constant 0 : index
    %c0_2 = arith.constant 0 : index
    %3 = vector.load %arg4[%c0, %c0_1, %c0_2] : memref<1x16x32xf32, #tpu.memory_space<vmem>>, vector<1x16x32xf32>
    %4 = vector.shape_cast %3 : vector<1x16x32xf32> to vector<16x32xf32>
    %cst = arith.constant 5.000000e-01 : f32
    %5 = vector.broadcast %cst : f32 to vector<16x32xf32>
    %6 = arith.mulf %5, %4 : vector<16x32xf32>
    %c0_3 = arith.constant 0 : index
    %c0_4 = arith.constant 0 : index
    %c0_5 = arith.constant 0 : index
    %7 = vector.load %arg5[%c0_3, %c0_4, %c0_5] : memref<1x32x16xf32, #tpu.memory_space<vmem>>, vector<1x32x16xf32>
    %8 = vector.shape_cast %7 : vector<1x32x16xf32> to vector<32x16xf32>
    %cst_6 = arith.constant 5.000000e-01 : f32
    %9 = vector.broadcast %cst_6 : f32 to vector<32x16xf32>
    %10 = arith.mulf %9, %8 : vector<32x16xf32>
    %c0_7 = arith.constant 0 : index
    %c0_8 = arith.constant 0 : index
    %c0_9 = arith.constant 0 : index
    %11 = vector.load %arg6[%c0_7, %c0_8, %c0_9] : memref<1x32x16xf32, #tpu.memory_space<vmem>>, vector<1x32x16xf32>
    %12 = vector.shape_cast %11 : vector<1x32x16xf32> to vector<32x16xf32>
    %cst_10 = arith.constant 5.000000e-01 : f32
    %13 = vector.broadcast %cst_10 : f32 to vector<32x16xf32>
    %14 = arith.mulf %13, %12 : vector<32x16xf32>
    %c0_11 = arith.constant 0 : index
    %c0_12 = arith.constant 0 : index
    %c0_13 = arith.constant 0 : index
    %15 = vector.load %arg7[%c0_11, %c0_12, %c0_13] : memref<1x16x16xf32, #tpu.memory_space<vmem>>, vector<1x16x16xf32>
    %16 = vector.shape_cast %15 : vector<1x16x16xf32> to vector<16x16xf32>
    %17 = vector.shape_cast %6 : vector<16x32xf32> to vector<16x32x1xf32>
    %18 = vector.shape_cast %10 : vector<32x16xf32> to vector<1x32x16xf32>
    %19 = vector.broadcast %17 : vector<16x32x1xf32> to vector<16x32x16xf32>
    %20 = vector.broadcast %18 : vector<1x32x16xf32> to vector<16x32x16xf32>
    %21 = arith.addf %19, %20 : vector<16x32x16xf32>
    %22 = math.tanh %21 : vector<16x32x16xf32>
    %cst_14 = arith.constant 1.000000e+00 : f32
    %23 = vector.broadcast %cst_14 : f32 to vector<16x32x16xf32>
    %24 = arith.addf %22, %23 : vector<16x32x16xf32>
    %25 = vector.shape_cast %14 : vector<32x16xf32> to vector<1x32x16xf32>
    %26 = vector.broadcast %25 : vector<1x32x16xf32> to vector<16x32x16xf32>
    %27 = arith.mulf %24, %26 : vector<16x32x16xf32>
    %28 = vector.shape_cast %16 : vector<16x16xf32> to vector<16x1x16xf32>
    %29 = vector.broadcast %28 : vector<16x1x16xf32> to vector<16x32x16xf32>
    %30 = arith.mulf %27, %29 : vector<16x32x16xf32>
    %c0_15 = arith.constant 0 : index
    %c0_16 = arith.constant 0 : index
    %31 = vector.load %arg9[%c0_15, %c0_16] : memref<16x32xf32, #tpu.memory_space<vmem>>, vector<16x32xf32>
    %cst_17 = arith.constant dense<0.000000e+00> : vector<16x32xf32>
    %32 = vector.multi_reduction <add>, %30, %cst_17 [2] : vector<16x32x16xf32> to vector<16x32xf32>
    %33 = arith.addf %31, %32 : vector<16x32xf32>
    %c0_18 = arith.constant 0 : index
    %c0_19 = arith.constant 0 : index
    %34 = vector.load %arg9[%c0_18, %c0_19] : memref<16x32xf32, #tpu.memory_space<vmem>>, vector<16x32xf32>
    tpu.vector_store %arg9[%c0_18, %c0_19], %33 {strides = array<i32>} : memref<16x32xf32, #tpu.memory_space<vmem>>, vector<16x32xf32>,
    %c0_i32_20 = arith.constant 0 : i32
    %35 = arith.cmpi eq, %arg2, %c0_i32_20 : i32
    %36 = arith.extui %35 : i1 to i32
    %c0_i32_21 = arith.constant 0 : i32
    %37 = arith.cmpi ne, %36, %c0_i32_21 : i32
    scf.if %37 {
      %c0_22 = arith.constant 0 : index
      %c0_23 = arith.constant 0 : index
      %c0_24 = arith.constant 0 : index
      %38 = vector.load %arg3[%c0_22, %c0_23, %c0_24] : memref<1x16x32xf32, #tpu.memory_space<vmem>>, vector<1x16x32xf32>
      %39 = vector.shape_cast %38 : vector<1x16x32xf32> to vector<16x32xf32>
      %c0_25 = arith.constant 0 : index
      %c0_26 = arith.constant 0 : index
      %40 = vector.load %arg9[%c0_25, %c0_26] : memref<16x32xf32, #tpu.memory_space<vmem>>, vector<16x32xf32>
      %41 = arith.addf %39, %40 : vector<16x32xf32>
      %c0_27 = arith.constant 0 : index
      %c0_28 = arith.constant 0 : index
      %c0_29 = arith.constant 0 : index
      %42 = vector.load %arg8[%c0_27, %c0_28, %c0_29] : memref<1x16x32xf32, #tpu.memory_space<vmem>>, vector<1x16x32xf32>
      %43 = vector.shape_cast %42 : vector<1x16x32xf32> to vector<16x32xf32>
      %44 = vector.shape_cast %41 : vector<16x32xf32> to vector<1x16x32xf32>
      tpu.vector_store %arg8[%c0_27, %c0_28, %c0_29], %44 {strides = array<i32>} : memref<1x16x32xf32, #tpu.memory_space<vmem>>, vector<1x16x32xf32>,
    } else {
    }
    return
  }
  func.func @transform_0(%arg0: i32, %arg1: i32, %arg2: i32) -> (i32, i32, i32) {
    %c0_i32 = arith.constant 0 : i32
    %c0_i32_0 = arith.constant 0 : i32
    return %arg0, %arg1, %c0_i32 : i32, i32, i32
  }
  func.func @transform_1(%arg0: i32, %arg1: i32, %arg2: i32) -> (i32, i32, i32) {
    %c0_i32 = arith.constant 0 : i32
    %c0_i32_0 = arith.constant 0 : i32
    return %arg0, %arg1, %c0_i32 : i32, i32, i32
  }
  func.func @transform_2(%arg0: i32, %arg1: i32, %arg2: i32) -> (i32, i32, i32) {
    %c0_i32 = arith.constant 0 : i32
    %c0_i32_0 = arith.constant 0 : i32
    return %arg0, %c0_i32, %arg2 : i32, i32, i32
  }
  func.func @transform_3(%arg0: i32, %arg1: i32, %arg2: i32) -> (i32, i32, i32) {
    %c0_i32 = arith.constant 0 : i32
    %c0_i32_0 = arith.constant 0 : i32
    return %arg0, %c0_i32, %arg2 : i32, i32, i32
  }
  func.func @transform_4(%arg0: i32, %arg1: i32, %arg2: i32) -> (i32, i32, i32) {
    %c0_i32 = arith.constant 0 : i32
    return %arg0, %arg1, %arg2 : i32, i32, i32
  }
  func.func @transform_5(%arg0: i32, %arg1: i32, %arg2: i32) -> (i32, i32, i32) {
    %c0_i32 = arith.constant 0 : i32
    %c0_i32_0 = arith.constant 0 : i32
    return %arg0, %arg1, %c0_i32 : i32, i32, i32
  }
}

</mosaic_0001>

<llo_original>
// kernel: gated_graph_conv.1
$region0: #{gated_graph_conv.1}
  #allocation0 [shape = 'u32[]', space=smem, size = 0x4, offset = 0x4, fixed_abs, tag = 'smem constant byte address 0x4 - core index']
  #allocation1 [shape = 'u32[144,128]{1,0:T(1,128)}', space=vmem, size = 0x12000, scoped, tag = 'internal scratch']
  #allocation2 [shape = 'f32[16,32]{1,0:T(8,128)}', space=vmem, size = 0x2000, scoped, tag = 'scratch operand']
  %s0 = inlined_call_operand.vmem [shape: f32[2,16,32], index: 0, kind: input, shape index: {}]
  %s1 = inlined_call_operand.vmem [shape: f32[2,16,32], index: 1, kind: input, shape index: {}]
  %s2 = inlined_call_operand.vmem [shape: f32[2,32,16], index: 2, kind: input, shape index: {}]
  %s3 = inlined_call_operand.vmem [shape: f32[2,32,16], index: 3, kind: input, shape index: {}]
  %s4 = inlined_call_operand.vmem [shape: f32[2,16,16], index: 4, kind: input, shape index: {}]
  %s5 = inlined_call_operand.hbm [shape: f32[2,16,32], index: 5, kind: output, shape index: {}]
  %s6 = sld [smem:[#allocation0]]
  $region61: #{gated_graph_conv.1} parent=0
    _
  %s8 = ssub.s32 1, %s6
  %s9 = scalar_select 0, %s8, %s6
  $region1: #{gated_graph_conv.1} parent=0
    #allocation3 [shape = 'u8[16384]{0}', space=vmem, size = 0x4000, scoped, tag = 'output window, operand 0']
    #allocation4 [shape = 's32[2]{0}', space=sflag, size = 0x8, scoped, tag = 'scoped memory for gated_graph_conv.1']
    %10 = vsyncpa [#allocation4], 0
    %s11 = scalar_lea.sflag [#allocation4], 1
    %12 = vsyncpa %s11, 0
    loop: start=0, step=1, limit=4
    $region2: #{gated_graph_conv.1} parent=1 // loop_pre_header
      _
    $region3: #{gated_graph_conv.1} parent=1 // loop_header
      %s14 = sphi 0, %s18
      %p15 = scmp.ge.s32.totalorder %s14, 4
      %s21 = sphi 0, %s40
      %s22 = sphi 0, %s36
      %s23 = sphi 0, %s32
      %s24 = sphi 0, %s21
      %s25 = sphi 0, %s22
      %s26 = sphi 0, %s23
      %s27 = sphi 0, %s24
      %s28 = sphi 0, %s25
      %s29 = sphi 0, %s26
      %s45 = sphi 0, %s47
      %s48 = sphi 0, %s45
      %s49 = sphi 0, %s48
      %s65 = sphi 0, %s49
      %s73 = sphi 0, %s75
      %s76 = sphi 0, %s73
      %s77 = sphi 0, %s76
      %s93 = sphi 0, %s77
      %s101 = sphi 0, %s103
      %s104 = sphi 0, %s101
      %s105 = sphi 0, %s104
      %s121 = sphi 0, %s105
      %s129 = sphi 0, %s131
      %s132 = sphi 0, %s129
      %s133 = sphi 0, %s132
      %s149 = sphi 0, %s133
      %s159 = sphi 0, %s161
      %s162 = sphi 0, %s159
      %s163 = sphi 0, %s162
      %s179 = sphi 0, %s163
      %s187 = sphi 0, %s189
      %s190 = sphi 0, %s187
      %s191 = sphi 0, %s190
      %s207 = sphi 0, %s191
    $region4: #{gated_graph_conv.1} parent=1 // loop_header_branch
      %17 = sbr.rel (%p15) target = $region8
    $region5: #{gated_graph_conv.1} parent=1 // loop_body
      %s19 = ssub.s32 %s14, 1
      %s20 = ssub.s32 %s14, 2
      %s30 = sadd.s32 1, %s23
      %p31 = scmp.ge.s32.totalorder %s30, 1
      %s32 = scalar_select %p31, 0, %s30
      %s33 = sadd.s32 1, %s22
      %s34 = scalar_select %p31, %s33, %s22
      %p35 = scmp.ge.s32.totalorder %s34, 1
      %s36 = scalar_select %p35, 0, %s34
      %s37 = sadd.s32 1, %s21
      %s38 = scalar_select %p35, %s37, %s21
      %p39 = scmp.ge.s32.totalorder %s38, 2
      %s40 = scalar_select %p39, 0, %s38
      %s41 = ssub.s32 %s21, %s40
      %s42 = ssub.s32 %s22, %s36
      %s43 = sor.u32 %s41, %s42
      %p44 = scmp.eq.s32.totalorder %s43, 0
      %s46 = sadd.s32 %s45, 1
      %s47 = scalar_select %p44, %s45, %s46
      %p50 = pneg %p44
      %p51 = scmp.eq.s32.totalorder %s14, 1
      %p52 = por %p50, %p51
      %p53 = scmp.ne.s32.totalorder %s45, %s48
      %p54 = scmp.eq.s32.totalorder %s14, 0
      %p55 = por %p53, %p54
      %p56 = scmp.ne.s32.totalorder %s45, %s48
      %p57 = scmp.eq.s32.totalorder %s19, 1
      %p58 = por %p56, %p57
      %p59 = scmp.ne.s32.totalorder %s48, %s49
      %p60 = scmp.eq.s32.totalorder %s19, 0
      %p61 = por %p59, %p60
      %p62 = scmp.ne.s32.totalorder %s48, %s49
      %p63 = scmp.eq.s32.totalorder %s20, 1
      %p64 = por %p62, %p63
      %p66 = scmp.ne.s32.totalorder %s49, %s65
      %p67 = scmp.eq.s32.totalorder %s20, 0
      %p68 = por %p66, %p67
      %s69 = ssub.s32 %s21, %s40
      %s70 = ssub.s32 %s22, %s36
      %s71 = sor.u32 %s69, %s70
      %p72 = scmp.eq.s32.totalorder %s71, 0
      %s74 = sadd.s32 %s73, 1
      %s75 = scalar_select %p72, %s73, %s74
      %p78 = pneg %p72
      %p79 = scmp.eq.s32.totalorder %s14, 1
      %p80 = por %p78, %p79
      %p81 = scmp.ne.s32.totalorder %s73, %s76
      %p82 = scmp.eq.s32.totalorder %s14, 0
      %p83 = por %p81, %p82
      %p84 = scmp.ne.s32.totalorder %s73, %s76
      %p85 = scmp.eq.s32.totalorder %s19, 1
      %p86 = por %p84, %p85
      %p87 = scmp.ne.s32.totalorder %s76, %s77
      %p88 = scmp.eq.s32.totalorder %s19, 0
      %p89 = por %p87, %p88
      %p90 = scmp.ne.s32.totalorder %s76, %s77
      %p91 = scmp.eq.s32.totalorder %s20, 1
      %p92 = por %p90, %p91
      %p94 = scmp.ne.s32.totalorder %s77, %s93
      %p95 = scmp.eq.s32.totalorder %s20, 0
      %p96 = por %p94, %p95
      %s97 = ssub.s32 %s21, %s40
      %s98 = ssub.s32 %s23, %s32
      %s99 = sor.u32 %s97, %s98
      %p100 = scmp.eq.s32.totalorder %s99, 0
      %s102 = sadd.s32 %s101, 1
      %s103 = scalar_select %p100, %s101, %s102
      %p106 = pneg %p100
      %p107 = scmp.eq.s32.totalorder %s14, 1
      %p108 = por %p106, %p107
      %p109 = scmp.ne.s32.totalorder %s101, %s104
      %p110 = scmp.eq.s32.totalorder %s14, 0
      %p111 = por %p109, %p110
      %p112 = scmp.ne.s32.totalorder %s101, %s104
      %p113 = scmp.eq.s32.totalorder %s19, 1
      %p114 = por %p112, %p113
      %p115 = scmp.ne.s32.totalorder %s104, %s105
      %p116 = scmp.eq.s32.totalorder %s19, 0
      %p117 = por %p115, %p116
      %p118 = scmp.ne.s32.totalorder %s104, %s105
      %p119 = scmp.eq.s32.totalorder %s20, 1
      %p120 = por %p118, %p119
      %p122 = scmp.ne.s32.totalorder %s105, %s121
      %p123 = scmp.eq.s32.totalorder %s20, 0
      %p124 = por %p122, %p123
      %s125 = ssub.s32 %s21, %s40
      %s126 = ssub.s32 %s23, %s32
      %s127 = sor.u32 %s125, %s126
      %p128 = scmp.eq.s32.totalorder %s127, 0
      %s130 = sadd.s32 %s129, 1
      %s131 = scalar_select %p128, %s129, %s130
      %p134 = pneg %p128
      %p135 = scmp.eq.s32.totalorder %s14, 1
      %p136 = por %p134, %p135
      %p137 = scmp.ne.s32.totalorder %s129, %s132
      %p138 = scmp.eq.s32.totalorder %s14, 0
      %p139 = por %p137, %p138
      %p140 = scmp.ne.s32.totalorder %s129, %s132
      %p141 = scmp.eq.s32.totalorder %s19, 1
      %p142 = por %p140, %p141
      %p143 = scmp.ne.s32.totalorder %s132, %s133
      %p144 = scmp.eq.s32.totalorder %s19, 0
      %p145 = por %p143, %p144
      %p146 = scmp.ne.s32.totalorder %s132, %s133
      %p147 = scmp.eq.s32.totalorder %s20, 1
      %p148 = por %p146, %p147
      %p150 = scmp.ne.s32.totalorder %s133, %s149
      %p151 = scmp.eq.s32.totalorder %s20, 0
      %p152 = por %p150, %p151
      %s153 = ssub.s32 %s21, %s40
      %s154 = ssub.s32 %s22, %s36
      %s155 = sor.u32 %s153, %s154
      %s156 = ssub.s32 %s23, %s32
      %s157 = sor.u32 %s155, %s156
      %p158 = scmp.eq.s32.totalorder %s157, 0
      %s160 = sadd.s32 %s159, 1
      %s161 = scalar_select %p158, %s159, %s160
      %p164 = pneg %p158
      %p165 = scmp.eq.s32.totalorder %s14, 1
      %p166 = por %p164, %p165
      %p167 = scmp.ne.s32.totalorder %s159, %s162
      %p168 = scmp.eq.s32.totalorder %s14, 0
      %p169 = por %p167, %p168
      %p170 = scmp.ne.s32.totalorder %s159, %s162
      %p171 = scmp.eq.s32.totalorder %s19, 1
      %p172 = por %p170, %p171
      %p173 = scmp.ne.s32.totalorder %s162, %s163
      %p174 = scmp.eq.s32.totalorder %s19, 0
      %p175 = por %p173, %p174
      %p176 = scmp.ne.s32.totalorder %s162, %s163
      %p177 = scmp.eq.s32.totalorder %s20, 1
      %p178 = por %p176, %p177
      %p180 = scmp.ne.s32.totalorder %s163, %s179
      %p181 = scmp.eq.s32.totalorder %s20, 0
      %p182 = por %p180, %p181
      %s183 = ssub.s32 %s21, %s40
      %s184 = ssub.s32 %s22, %s36
      %s185 = sor.u32 %s183, %s184
      %p186 = scmp.eq.s32.totalorder %s185, 0
      %s188 = sadd.s32 %s187, 1
      %s189 = scalar_select %p186, %s187, %s188
      %p192 = pneg %p186
      %p193 = scmp.eq.s32.totalorder %s14, 1
      %p194 = por %p192, %p193
      %p195 = scmp.ne.s32.totalorder %s187, %s190
      %p196 = scmp.eq.s32.totalorder %s14, 0
      %p197 = por %p195, %p196
      %p198 = scmp.ne.s32.totalorder %s187, %s190
      %p199 = scmp.eq.s32.totalorder %s19, 1
      %p200 = por %p198, %p199
      %p201 = scmp.ne.s32.totalorder %s190, %s191
      %p202 = scmp.eq.s32.totalorder %s19, 0
      %p203 = por %p201, %p202
      %p204 = scmp.ne.s32.totalorder %s190, %s191
      %p205 = scmp.eq.s32.totalorder %s20, 1
      %p206 = por %p204, %p205
      %p208 = scmp.ne.s32.totalorder %s191, %s207
      %p209 = scmp.eq.s32.totalorder %s20, 0
      %p210 = por %p208, %p209
      %p211 = scmp.le.s32.totalorder 1, %s14
      %p212 = scmp.lt.s32.totalorder %s14, 3
      %p213 = pnand %p211, %p212
      %p214 = pneg %p213
      // Predicated region
      $region9: #{gated_graph_conv.1} parent=5 // pred_check
        _
      $region10: #{gated_graph_conv.1} parent=5 // pred_check_branch
        %216 = sbr.rel (%p213) target = $region12
      $region11: #{gated_graph_conv.1} parent=5 // pred_region
        %s217 = ssub.s32 %s14, 1
      $region12: #{gated_graph_conv.1} parent=5 // pred_fallthru
        _
      %p218 = scmp.lt.s32.totalorder %s14, 2
      // Predicated region
      $region13: #{gated_graph_conv.1} parent=5 // pred_check
        %p219 = pneg %p218
      $region14: #{gated_graph_conv.1} parent=5 // pred_check_branch
        %221 = sbr.rel (%p219) target = $region16
      $region15: #{gated_graph_conv.1} parent=5 // pred_region
        // Predicated region
        $region17: #{gated_graph_conv.1} parent=15 // pred_check
          %p222 = pneg %p55
        $region18: #{gated_graph_conv.1} parent=15 // pred_check_branch
          %224 = sbr.rel (%p222) target = $region20
        $region19: #{gated_graph_conv.1} parent=15 // pred_region
          %s225 = smul.u32 2, %s22
          %p226 = scmp.lt.s32.totalorder %s21, 1
          %s227 = scalar_select %p226, %s21, 1
          %p228 = scmp.lt.s32.totalorder %s225, 1
          %s229 = scalar_select %p228, %s225, 1
          %s230 = smul.addr %s227, 2
          %s231 = sadd.s32 %s229, %s230
          %s232 = smul.addr %s231, 8
          %s233 = scalar_lea.vmem %s0, %s232
          %s234 = smul.u32 2, %s22
        $region20: #{gated_graph_conv.1} parent=15 // pred_fallthru
          _
        // Predicated region
        $region21: #{gated_graph_conv.1} parent=15 // pred_check
          %p235 = pneg %p83
        $region22: #{gated_graph_conv.1} parent=15 // pred_check_branch
          %237 = sbr.rel (%p235) target = $region24
        $region23: #{gated_graph_conv.1} parent=15 // pred_region
          %s238 = smul.u32 2, %s22
          %p239 = scmp.lt.s32.totalorder %s21, 1
          %s240 = scalar_select %p239, %s21, 1
          %p241 = scmp.lt.s32.totalorder %s238, 1
          %s242 = scalar_select %p241, %s238, 1
          %s243 = smul.addr %s240, 2
          %s244 = sadd.s32 %s242, %s243
          %s245 = smul.addr %s244, 8
          %s246 = scalar_lea.vmem %s1, %s245
          %s247 = smul.u32 2, %s22
        $region24: #{gated_graph_conv.1} parent=15 // pred_fallthru
          _
        // Predicated region
        $region25: #{gated_graph_conv.1} parent=15 // pred_check
          %p248 = pneg %p111
        $region26: #{gated_graph_conv.1} parent=15 // pred_check_branch
          %250 = sbr.rel (%p248) target = $region28
        $region27: #{gated_graph_conv.1} parent=15 // pred_region
          %p251 = scmp.lt.s32.totalorder %s21, 1
          %s252 = scalar_select %p251, %s21, 1
          %p253 = scmp.lt.s32.totalorder %s23, 0
          %s254 = scalar_select %p253, %s23, 0
          %s255 = smul.addr %s252, 4
          %s256 = sadd.s32 %s254, %s255
          %s257 = smul.addr %s256, 8
          %s258 = scalar_lea.vmem %s2, %s257
        $region28: #{gated_graph_conv.1} parent=15 // pred_fallthru
          _
        // Predicated region
        $region29: #{gated_graph_conv.1} parent=15 // pred_check
          %p259 = pneg %p139
        $region30: #{gated_graph_conv.1} parent=15 // pred_check_branch
          %261 = sbr.rel (%p259) target = $region32
        $region31: #{gated_graph_conv.1} parent=15 // pred_region
          %p262 = scmp.lt.s32.totalorder %s21, 1
          %s263 = scalar_select %p262, %s21, 1
          %p264 = scmp.lt.s32.totalorder %s23, 0
          %s265 = scalar_select %p264, %s23, 0
          %s266 = smul.addr %s263, 4
          %s267 = sadd.s32 %s265, %s266
          %s268 = smul.addr %s267, 8
          %s269 = scalar_lea.vmem %s3, %s268
        $region32: #{gated_graph_conv.1} parent=15 // pred_fallthru
          _
        // Predicated region
        $region33: #{gated_graph_conv.1} parent=15 // pred_check
          %p270 = pneg %p169
        $region34: #{gated_graph_conv.1} parent=15 // pred_check_branch
          %272 = sbr.rel (%p270) target = $region36
        $region35: #{gated_graph_conv.1} parent=15 // pred_region
          %s273 = smul.u32 2, %s22
          %p274 = scmp.lt.s32.totalorder %s21, 1
          %s275 = scalar_select %p274, %s21, 1
          %p276 = scmp.lt.s32.totalorder %s273, 1
          %s277 = scalar_select %p276, %s273, 1
          %p278 = scmp.lt.s32.totalorder %s23, 0
          %s279 = scalar_select %p278, %s23, 0
          %s280 = sadd.s32 %s279, %s277
          %s281 = smul.addr %s275, 2
          %s282 = sadd.s32 %s280, %s281
          %s283 = smul.addr %s282, 8
          %s284 = scalar_lea.vmem %s4, %s283
          %s285 = smul.u32 2, %s22
        $region36: #{gated_graph_conv.1} parent=15 // pred_fallthru
          _
      $region16: #{gated_graph_conv.1} parent=5 // pred_fallthru
        _
      %p286 = scmp.le.s32.totalorder 1, %s14
      %p287 = scmp.lt.s32.totalorder %s14, 3
      %p288 = pnand %p286, %p287
      %p289 = pneg %p288
      // Predicated region
      $region37: #{gated_graph_conv.1} parent=5 // pred_check
        _
      $region38: #{gated_graph_conv.1} parent=5 // pred_check_branch
        %291 = sbr.rel (%p288) target = $region40
      $region39: #{gated_graph_conv.1} parent=5 // pred_region
        %s292 = ssub.s32 %s14, 1
        %s293 = smul.u32 2, %s25
        %p294 = scmp.lt.s32.totalorder %s24, 1
        %s295 = scalar_select %p294, %s24, 1
        %p296 = scmp.lt.s32.totalorder %s293, 1
        %s297 = scalar_select %p296, %s293, 1
        %s298 = smul.addr %s295, 2
        %s299 = sadd.s32 %s297, %s298
        %s300 = smul.addr %s299, 8
        %s301 = scalar_lea.vmem %s0, %s300
        %p302 = pneg %p61
        %p303 = pneg %p58
        %s304 = smul.u32 2, %s25
        %p305 = scmp.lt.s32.totalorder %s24, 1
        %s306 = scalar_select %p305, %s24, 1
        %p307 = scmp.lt.s32.totalorder %s304, 1
        %s308 = scalar_select %p307, %s304, 1
        %s309 = smul.addr %s306, 2
        %s310 = sadd.s32 %s308, %s309
        %s311 = smul.addr %s310, 8
        %s312 = scalar_lea.vmem %s1, %s311
        %p313 = pneg %p89
        %p314 = pneg %p86
        %p315 = scmp.lt.s32.totalorder %s24, 1
        %s316 = scalar_select %p315, %s24, 1
        %p317 = scmp.lt.s32.totalorder %s26, 0
        %s318 = scalar_select %p317, %s26, 0
        %s319 = smul.addr %s316, 4
        %s320 = sadd.s32 %s318, %s319
        %s321 = smul.addr %s320, 8
        %s322 = scalar_lea.vmem %s2, %s321
        %p323 = pneg %p117
        %p324 = pneg %p114
        %p325 = scmp.lt.s32.totalorder %s24, 1
        %s326 = scalar_select %p325, %s24, 1
        %p327 = scmp.lt.s32.totalorder %s26, 0
        %s328 = scalar_select %p327, %s26, 0
        %s329 = smul.addr %s326, 4
        %s330 = sadd.s32 %s328, %s329
        %s331 = smul.addr %s330, 8
        %s332 = scalar_lea.vmem %s3, %s331
        %p333 = pneg %p145
        %p334 = pneg %p142
        %s335 = smul.u32 2, %s25
        %p336 = scmp.lt.s32.totalorder %s24, 1
        %s337 = scalar_select %p336, %s24, 1
        %p338 = scmp.lt.s32.totalorder %s335, 1
        %s339 = scalar_select %p338, %s335, 1
        %p340 = scmp.lt.s32.totalorder %s26, 0
        %s341 = scalar_select %p340, %s26, 0
        %s342 = sadd.s32 %s341, %s339
        %s343 = smul.addr %s337, 2
        %s344 = sadd.s32 %s342, %s343
        %s345 = smul.addr %s344, 8
        %s346 = scalar_lea.vmem %s4, %s345
        %p347 = pneg %p175
        %p348 = pneg %p172
        %p349 = pneg %p203
        %p350 = pneg %p200
        %s351 = sand.u32 %s190, 1
        %s352 = scalar_lea.sflag [#allocation4], %s351
        %s353 = sand.u32 %s190, 1
        %s354 = smul.addr %s353, 16
        %s355 = scalar_lea.vmem [#allocation3], %s354
        %s356 = smul.u32 2, %s25
        %p357 = scmp.lt.s32.totalorder %s24, 1
        %s358 = scalar_select %p357, %s24, 1
        %p359 = scmp.lt.s32.totalorder %s356, 1
        %s360 = scalar_select %p359, %s356, 1
        %s361 = smul.addr %s358, 2
        %s362 = sadd.s32 %s360, %s361
        %s363 = smul.addr %s362, 8
        %s364 = scalar_lea.vmem %s0, %s363
        %s365 = smul.u32 2, %s25
        %s366 = smul.u32 2, %s25
        %p367 = scmp.lt.s32.totalorder %s24, 1
        %s368 = scalar_select %p367, %s24, 1
        %p369 = scmp.lt.s32.totalorder %s366, 1
        %s370 = scalar_select %p369, %s366, 1
        %s371 = smul.addr %s368, 2
        %s372 = sadd.s32 %s370, %s371
        %s373 = smul.addr %s372, 8
        %s374 = scalar_lea.vmem %s1, %s373
        %s375 = smul.u32 2, %s25
        %p376 = scmp.lt.s32.totalorder %s24, 1
        %s377 = scalar_select %p376, %s24, 1
        %p378 = scmp.lt.s32.totalorder %s26, 0
        %s379 = scalar_select %p378, %s26, 0
        %s380 = smul.addr %s377, 4
        %s381 = sadd.s32 %s379, %s380
        %s382 = smul.addr %s381, 8
        %s383 = scalar_lea.vmem %s2, %s382
        %p384 = scmp.lt.s32.totalorder %s24, 1
        %s385 = scalar_select %p384, %s24, 1
        %p386 = scmp.lt.s32.totalorder %s26, 0
        %s387 = scalar_select %p386, %s26, 0
        %s388 = smul.addr %s385, 4
        %s389 = sadd.s32 %s387, %s388
        %s390 = smul.addr %s389, 8
        %s391 = scalar_lea.vmem %s3, %s390
        %s392 = smul.u32 2, %s25
        %p393 = scmp.lt.s32.totalorder %s24, 1
        %s394 = scalar_select %p393, %s24, 1
        %p395 = scmp.lt.s32.totalorder %s392, 1
        %s396 = scalar_select %p395, %s392, 1
        %p397 = scmp.lt.s32.totalorder %s26, 0
        %s398 = scalar_select %p397, %s26, 0
        %s399 = sadd.s32 %s398, %s396
        %s400 = smul.addr %s394, 2
        %s401 = sadd.s32 %s399, %s400
        %s402 = smul.addr %s401, 8
        %s403 = scalar_lea.vmem %s4, %s402
        %s404 = smul.u32 2, %s25
        %s405 = smul.u32 2, %s25
        %p406 = scmp.eq.s32.totalorder %s26, 0
        // Predicated region
        $region41: #{gated_graph_conv.1} parent=39 // pred_check
          %p407 = pneg %p406
        $region42: #{gated_graph_conv.1} parent=39 // pred_check_branch
          %409 = sbr.rel (%p407) target = $region44
        $region43: #{gated_graph_conv.1} parent=39 // pred_region
          %vm410 = vcmask 261120
          %411 = vst.msk [vmem:[#allocation2] sm:$0xff] %vm410, 0.0
          %412 = vst.msk [vmem:[#allocation2 + $0x8] sm:$0xff] %vm410, 0.0
        $region44: #{gated_graph_conv.1} parent=39 // pred_fallthru
          _
        %v413 = vld [vmem:[%s374] sm:$0xff]
        %v414 = vld [vmem:[%s374 + $0x8] sm:$0xff]
        %v415 = vmul.f32 %v413, 0.5
        %v416 = vmul.f32 %v414, 0.5
        %v417 = vld [vmem:[%s383] sm:$0xff]
        %v418 = vld [vmem:[%s383 + $0x8] sm:$0xff]
        %v419 = vld [vmem:[%s383 + $0x10] sm:$0xff]
        %v420 = vld [vmem:[%s383 + $0x18] sm:$0xff]
        %v421 = vmul.f32 %v417, 0.5
        %v422 = vmul.f32 %v418, 0.5
        %v423 = vmul.f32 %v419, 0.5
        %v424 = vmul.f32 %v420, 0.5
        %v425 = vld [vmem:[%s391] sm:$0xff]
        %v426 = vld [vmem:[%s391 + $0x8] sm:$0xff]
        %v427 = vld [vmem:[%s391 + $0x10] sm:$0xff]
        %v428 = vld [vmem:[%s391 + $0x18] sm:$0xff]
        %v429 = vmul.f32 %v425, 0.5
        %v430 = vmul.f32 %v426, 0.5
        %v431 = vmul.f32 %v427, 0.5
        %v432 = vmul.f32 %v428, 0.5
        %v433 = vld [vmem:[%s403] sm:$0xff]
        %v434 = vld [vmem:[%s403 + $0x8] sm:$0xff]
        %v435 = vlaneseq
        %v436 = vshrl.u32 %v435, 7
        %v437 = vsub.s32 0, %v436
        %v438 = vrot.slane %v415, %v437
        %440 = vbcast.lane.b32.xlu0 %v438, 256
        %v441 = vpop.permute.xlu0 %440
        %s443 = sor.u32 256, 8
        %444 = vbcast.lane.b32.xlu0 %v438, %s443
        %v445 = vpop.permute.xlu0 %444
        %s447 = sor.u32 256, 16
        %448 = vbcast.lane.b32.xlu0 %v438, %s447
        %v449 = vpop.permute.xlu0 %448
        %s451 = sor.u32 256, 24
        %452 = vbcast.lane.b32.xlu0 %v438, %s451
        %v453 = vpop.permute.xlu0 %452
        %v454 = vlaneseq
        %v455 = vshrl.u32 %v454, 7
        %v456 = vsub.s32 1, %v455
        %v457 = vrot.slane %v415, %v456
        %459 = vbcast.lane.b32.xlu0 %v457, 256
        %v460 = vpop.permute.xlu0 %459
        %s462 = sor.u32 256, 8
        %463 = vbcast.lane.b32.xlu0 %v457, %s462
        %v464 = vpop.permute.xlu0 %463
        %s466 = sor.u32 256, 16
        %467 = vbcast.lane.b32.xlu0 %v457, %s466
        %v468 = vpop.permute.xlu0 %467
        %s470 = sor.u32 256, 24
        %471 = vbcast.lane.b32.xlu0 %v457, %s470
        %v472 = vpop.permute.xlu0 %471
        %v473 = vlaneseq
        %v474 = vshrl.u32 %v473, 7
        %v475 = vsub.s32 2, %v474
        %v476 = vrot.slane %v415, %v475
        %478 = vbcast.lane.b32.xlu0 %v476, 256
        %v479 = vpop.permute.xlu0 %478
        %s481 = sor.u32 256, 8
        %482 = vbcast.lane.b32.xlu0 %v476, %s481
        %v483 = vpop.permute.xlu0 %482
        %s485 = sor.u32 256, 16
        %486 = vbcast.lane.b32.xlu0 %v476, %s485
        %v487 = vpop.permute.xlu0 %486
        %s489 = sor.u32 256, 24
        %490 = vbcast.lane.b32.xlu0 %v476, %s489
        %v491 = vpop.permute.xlu0 %490
        %v492 = vlaneseq
        %v493 = vshrl.u32 %v492, 7
        %v494 = vsub.s32 3, %v493
        %v495 = vrot.slane %v415, %v494
        %497 = vbcast.lane.b32.xlu0 %v495, 256
        %v498 = vpop.permute.xlu0 %497
        %s500 = sor.u32 256, 8
        %501 = vbcast.lane.b32.xlu0 %v495, %s500
        %v502 = vpop.permute.xlu0 %501
        %s504 = sor.u32 256, 16
        %505 = vbcast.lane.b32.xlu0 %v495, %s504
        %v506 = vpop.permute.xlu0 %505
        %s508 = sor.u32 256, 24
        %509 = vbcast.lane.b32.xlu0 %v495, %s508
        %v510 = vpop.permute.xlu0 %509
        %v511 = vlaneseq
        %v512 = vshrl.u32 %v511, 7
        %v513 = vsub.s32 4, %v512
        %v514 = vrot.slane %v415, %v513
        %516 = vbcast.lane.b32.xlu0 %v514, 256
        %v517 = vpop.permute.xlu0 %516
        %s519 = sor.u32 256, 8
        %520 = vbcast.lane.b32.xlu0 %v514, %s519
        %v521 = vpop.permute.xlu0 %520
        %s523 = sor.u32 256, 16
        %524 = vbcast.lane.b32.xlu0 %v514, %s523
        %v525 = vpop.permute.xlu0 %524
        %s527 = sor.u32 256, 24
        %528 = vbcast.lane.b32.xlu0 %v514, %s527
        %v529 = vpop.permute.xlu0 %528
        %v530 = vlaneseq
        %v531 = vshrl.u32 %v530, 7
        %v532 = vsub.s32 5, %v531
        %v533 = vrot.slane %v415, %v532
        %535 = vbcast.lane.b32.xlu0 %v533, 256
        %v536 = vpop.permute.xlu0 %535
        %s538 = sor.u32 256, 8
        %539 = vbcast.lane.b32.xlu0 %v533, %s538
        %v540 = vpop.permute.xlu0 %539
        %s542 = sor.u32 256, 16
        %543 = vbcast.lane.b32.xlu0 %v533, %s542
        %v544 = vpop.permute.xlu0 %543
        %s546 = sor.u32 256, 24
        %547 = vbcast.lane.b32.xlu0 %v533, %s546
        %v548 = vpop.permute.xlu0 %547
        %v549 = vlaneseq
        %v550 = vshrl.u32 %v549, 7
        %v551 = vsub.s32 6, %v550
        %v552 = vrot.slane %v415, %v551
        %554 = vbcast.lane.b32.xlu0 %v552, 256
        %v555 = vpop.permute.xlu0 %554
        %s557 = sor.u32 256, 8
        %558 = vbcast.lane.b32.xlu0 %v552, %s557
        %v559 = vpop.permute.xlu0 %558
        %s561 = sor.u32 256, 16
        %562 = vbcast.lane.b32.xlu0 %v552, %s561
        %v563 = vpop.permute.xlu0 %562
        %s565 = sor.u32 256, 24
        %566 = vbcast.lane.b32.xlu0 %v552, %s565
        %v567 = vpop.permute.xlu0 %566
        %v568 = vlaneseq
        %v569 = vshrl.u32 %v568, 7
        %v570 = vsub.s32 7, %v569
        %v571 = vrot.slane %v415, %v570
        %573 = vbcast.lane.b32.xlu0 %v571, 256
        %v574 = vpop.permute.xlu0 %573
        %s576 = sor.u32 256, 8
        %577 = vbcast.lane.b32.xlu0 %v571, %s576
        %v578 = vpop.permute.xlu0 %577
        %s580 = sor.u32 256, 16
        %581 = vbcast.lane.b32.xlu0 %v571, %s580
        %v582 = vpop.permute.xlu0 %581
        %s584 = sor.u32 256, 24
        %585 = vbcast.lane.b32.xlu0 %v571, %s584
        %v586 = vpop.permute.xlu0 %585
        %v587 = vlaneseq
        %v588 = vshrl.u32 %v587, 7
        %v589 = vsub.s32 0, %v588
        %v590 = vrot.slane %v416, %v589
        %592 = vbcast.lane.b32.xlu0 %v590, 256
        %v593 = vpop.permute.xlu0 %592
        %s595 = sor.u32 256, 8
        %596 = vbcast.lane.b32.xlu0 %v590, %s595
        %v597 = vpop.permute.xlu0 %596
        %s599 = sor.u32 256, 16
        %600 = vbcast.lane.b32.xlu0 %v590, %s599
        %v601 = vpop.permute.xlu0 %600
        %s603 = sor.u32 256, 24
        %604 = vbcast.lane.b32.xlu0 %v590, %s603
        %v605 = vpop.permute.xlu0 %604
        %v606 = vlaneseq
        %v607 = vshrl.u32 %v606, 7
        %v608 = vsub.s32 1, %v607
        %v609 = vrot.slane %v416, %v608
        %611 = vbcast.lane.b32.xlu0 %v609, 256
        %v612 = vpop.permute.xlu0 %611
        %s614 = sor.u32 256, 8
        %615 = vbcast.lane.b32.xlu0 %v609, %s614
        %v616 = vpop.permute.xlu0 %615
        %s618 = sor.u32 256, 16
        %619 = vbcast.lane.b32.xlu0 %v609, %s618
        %v620 = vpop.permute.xlu0 %619
        %s622 = sor.u32 256, 24
        %623 = vbcast.lane.b32.xlu0 %v609, %s622
        %v624 = vpop.permute.xlu0 %623
        %v625 = vlaneseq
        %v626 = vshrl.u32 %v625, 7
        %v627 = vsub.s32 2, %v626
        %v628 = vrot.slane %v416, %v627
        %630 = vbcast.lane.b32.xlu0 %v628, 256
        %v631 = vpop.permute.xlu0 %630
        %s633 = sor.u32 256, 8
        %634 = vbcast.lane.b32.xlu0 %v628, %s633
        %v635 = vpop.permute.xlu0 %634
        %s637 = sor.u32 256, 16
        %638 = vbcast.lane.b32.xlu0 %v628, %s637
        %v639 = vpop.permute.xlu0 %638
        %s641 = sor.u32 256, 24
        %642 = vbcast.lane.b32.xlu0 %v628, %s641
        %v643 = vpop.permute.xlu0 %642
        %v644 = vlaneseq
        %v645 = vshrl.u32 %v644, 7
        %v646 = vsub.s32 3, %v645
        %v647 = vrot.slane %v416, %v646
        %649 = vbcast.lane.b32.xlu0 %v647, 256
        %v650 = vpop.permute.xlu0 %649
        %s652 = sor.u32 256, 8
        %653 = vbcast.lane.b32.xlu0 %v647, %s652
        %v654 = vpop.permute.xlu0 %653
        %s656 = sor.u32 256, 16
        %657 = vbcast.lane.b32.xlu0 %v647, %s656
        %v658 = vpop.permute.xlu0 %657
        %s660 = sor.u32 256, 24
        %661 = vbcast.lane.b32.xlu0 %v647, %s660
        %v662 = vpop.permute.xlu0 %661
        %v663 = vlaneseq
        %v664 = vshrl.u32 %v663, 7
        %v665 = vsub.s32 4, %v664
        %v666 = vrot.slane %v416, %v665
        %668 = vbcast.lane.b32.xlu0 %v666, 256
        %v669 = vpop.permute.xlu0 %668
        %s671 = sor.u32 256, 8
        %672 = vbcast.lane.b32.xlu0 %v666, %s671
        %v673 = vpop.permute.xlu0 %672
        %s675 = sor.u32 256, 16
        %676 = vbcast.lane.b32.xlu0 %v666, %s675
        %v677 = vpop.permute.xlu0 %676
        %s679 = sor.u32 256, 24
        %680 = vbcast.lane.b32.xlu0 %v666, %s679
        %v681 = vpop.permute.xlu0 %680
        %v682 = vlaneseq
        %v683 = vshrl.u32 %v682, 7
        %v684 = vsub.s32 5, %v683
        %v685 = vrot.slane %v416, %v684
        %687 = vbcast.lane.b32.xlu0 %v685, 256
        %v688 = vpop.permute.xlu0 %687
        %s690 = sor.u32 256, 8
        %691 = vbcast.lane.b32.xlu0 %v685, %s690
        %v692 = vpop.permute.xlu0 %691
        %s694 = sor.u32 256, 16
        %695 = vbcast.lane.b32.xlu0 %v685, %s694
        %v696 = vpop.permute.xlu0 %695
        %s698 = sor.u32 256, 24
        %699 = vbcast.lane.b32.xlu0 %v685, %s698
        %v700 = vpop.permute.xlu0 %699
        %v701 = vlaneseq
        %v702 = vshrl.u32 %v701, 7
        %v703 = vsub.s32 6, %v702
        %v704 = vrot.slane %v416, %v703
        %706 = vbcast.lane.b32.xlu0 %v704, 256
        %v707 = vpop.permute.xlu0 %706
        %s709 = sor.u32 256, 8
        %710 = vbcast.lane.b32.xlu0 %v704, %s709
        %v711 = vpop.permute.xlu0 %710
        %s713 = sor.u32 256, 16
        %714 = vbcast.lane.b32.xlu0 %v704, %s713
        %v715 = vpop.permute.xlu0 %714
        %s717 = sor.u32 256, 24
        %718 = vbcast.lane.b32.xlu0 %v704, %s717
        %v719 = vpop.permute.xlu0 %718
        %v720 = vlaneseq
        %v721 = vshrl.u32 %v720, 7
        %v722 = vsub.s32 7, %v721
        %v723 = vrot.slane %v416, %v722
        %725 = vbcast.lane.b32.xlu0 %v723, 256
        %v726 = vpop.permute.xlu0 %725
        %s728 = sor.u32 256, 8
        %729 = vbcast.lane.b32.xlu0 %v723, %s728
        %v730 = vpop.permute.xlu0 %729
        %s732 = sor.u32 256, 16
        %733 = vbcast.lane.b32.xlu0 %v723, %s732
        %v734 = vpop.permute.xlu0 %733
        %s736 = sor.u32 256, 24
        %737 = vbcast.lane.b32.xlu0 %v723, %s736
        %v738 = vpop.permute.xlu0 %737
        %v739 = vadd.f32 %v441, %v421
        %v740 = vadd.f32 %v445, %v422
        %v741 = vadd.f32 %v449, %v423
        %v742 = vadd.f32 %v453, %v424
        %v743 = vadd.f32 %v460, %v421
        %v744 = vadd.f32 %v464, %v422
        %v745 = vadd.f32 %v468, %v423
        %v746 = vadd.f32 %v472, %v424
        %v747 = vadd.f32 %v479, %v421
        %v748 = vadd.f32 %v483, %v422
        %v749 = vadd.f32 %v487, %v423
        %v750 = vadd.f32 %v491, %v424
        %v751 = vadd.f32 %v498, %v421
        %v752 = vadd.f32 %v502, %v422
        %v753 = vadd.f32 %v506, %v423
        %v754 = vadd.f32 %v510, %v424
        %v755 = vadd.f32 %v517, %v421
        %v756 = vadd.f32 %v521, %v422
        %v757 = vadd.f32 %v525, %v423
        %v758 = vadd.f32 %v529, %v424
        %v759 = vadd.f32 %v536, %v421
        %v760 = vadd.f32 %v540, %v422
        %v761 = vadd.f32 %v544, %v423
        %v762 = vadd.f32 %v548, %v424
        %v763 = vadd.f32 %v555, %v421
        %v764 = vadd.f32 %v559, %v422
        %v765 = vadd.f32 %v563, %v423
        %v766 = vadd.f32 %v567, %v424
        %v767 = vadd.f32 %v574, %v421
        %v768 = vadd.f32 %v578, %v422
        %v769 = vadd.f32 %v582, %v423
        %v770 = vadd.f32 %v586, %v424
        %v771 = vadd.f32 %v593, %v421
        %v772 = vadd.f32 %v597, %v422
        %v773 = vadd.f32 %v601, %v423
        %v774 = vadd.f32 %v605, %v424
        %v775 = vadd.f32 %v612, %v421
        %v776 = vadd.f32 %v616, %v422
        %v777 = vadd.f32 %v620, %v423
        %v778 = vadd.f32 %v624, %v424
        %v779 = vadd.f32 %v631, %v421
        %v780 = vadd.f32 %v635, %v422
        %v781 = vadd.f32 %v639, %v423
        %v782 = vadd.f32 %v643, %v424
        %v783 = vadd.f32 %v650, %v421
        %v784 = vadd.f32 %v654, %v422
        %v785 = vadd.f32 %v658, %v423
        %v786 = vadd.f32 %v662, %v424
        %v787 = vadd.f32 %v669, %v421
        %v788 = vadd.f32 %v673, %v422
        %v789 = vadd.f32 %v677, %v423
        %v790 = vadd.f32 %v681, %v424
        %v791 = vadd.f32 %v688, %v421
        %v792 = vadd.f32 %v692, %v422
        %v793 = vadd.f32 %v696, %v423
        %v794 = vadd.f32 %v700, %v424
        %v795 = vadd.f32 %v707, %v421
        %v796 = vadd.f32 %v711, %v422
        %v797 = vadd.f32 %v715, %v423
        %v798 = vadd.f32 %v719, %v424
        %v799 = vadd.f32 %v726, %v421
        %v800 = vadd.f32 %v730, %v422
        %v801 = vadd.f32 %v734, %v423
        %v802 = vadd.f32 %v738, %v424
        %v803 = vtanh.pop %v739
        %v804 = vtanh.pop %v740
        %v805 = vtanh.pop %v741
        %v806 = vtanh.pop %v742
        %v807 = vtanh.pop %v743
        %v808 = vtanh.pop %v744
        %v809 = vtanh.pop %v745
        %v810 = vtanh.pop %v746
        %v811 = vtanh.pop %v747
        %v812 = vtanh.pop %v748
        %v813 = vtanh.pop %v749
        %v814 = vtanh.pop %v750
        %v815 = vtanh.pop %v751
        %v816 = vtanh.pop %v752
        %v817 = vtanh.pop %v753
        %v818 = vtanh.pop %v754
        %v819 = vtanh.pop %v755
        %v820 = vtanh.pop %v756
        %v821 = vtanh.pop %v757
        %v822 = vtanh.pop %v758
        %v823 = vtanh.pop %v759
        %v824 = vtanh.pop %v760
        %v825 = vtanh.pop %v761
        %v826 = vtanh.pop %v762
        %v827 = vtanh.pop %v763
        %v828 = vtanh.pop %v764
        %v829 = vtanh.pop %v765
        %v830 = vtanh.pop %v766
        %v831 = vtanh.pop %v767
        %v832 = vtanh.pop %v768
        %v833 = vtanh.pop %v769
        %v834 = vtanh.pop %v770
        %v835 = vtanh.pop %v771
        %v836 = vtanh.pop %v772
        %v837 = vtanh.pop %v773
        %v838 = vtanh.pop %v774
        %v839 = vtanh.pop %v775
        %v840 = vtanh.pop %v776
        %v841 = vtanh.pop %v777
        %v842 = vtanh.pop %v778
        %v843 = vtanh.pop %v779
        %v844 = vtanh.pop %v780
        %v845 = vtanh.pop %v781
        %v846 = vtanh.pop %v782
        %v847 = vtanh.pop %v783
        %v848 = vtanh.pop %v784
        %v849 = vtanh.pop %v785
        %v850 = vtanh.pop %v786
        %v851 = vtanh.pop %v787
        %v852 = vtanh.pop %v788
        %v853 = vtanh.pop %v789
        %v854 = vtanh.pop %v790
        %v855 = vtanh.pop %v791
        %v856 = vtanh.pop %v792
        %v857 = vtanh.pop %v793
        %v858 = vtanh.pop %v794
        %v859 = vtanh.pop %v795
        %v860 = vtanh.pop %v796
        %v861 = vtanh.pop %v797
        %v862 = vtanh.pop %v798
        %v863 = vtanh.pop %v799
        %v864 = vtanh.pop %v800
        %v865 = vtanh.pop %v801
        %v866 = vtanh.pop %v802
        %v867 = vadd.f32 %v803, 1.0
        %v868 = vadd.f32 %v804, 1.0
        %v869 = vadd.f32 %v805, 1.0
        %v870 = vadd.f32 %v806, 1.0
        %v871 = vadd.f32 %v807, 1.0
        %v872 = vadd.f32 %v808, 1.0
        %v873 = vadd.f32 %v809, 1.0
        %v874 = vadd.f32 %v810, 1.0
        %v875 = vadd.f32 %v811, 1.0
        %v876 = vadd.f32 %v812, 1.0
        %v877 = vadd.f32 %v813, 1.0
        %v878 = vadd.f32 %v814, 1.0
        %v879 = vadd.f32 %v815, 1.0
        %v880 = vadd.f32 %v816, 1.0
        %v881 = vadd.f32 %v817, 1.0
        %v882 = vadd.f32 %v818, 1.0
        %v883 = vadd.f32 %v819, 1.0
        %v884 = vadd.f32 %v820, 1.0
        %v885 = vadd.f32 %v821, 1.0
        %v886 = vadd.f32 %v822, 1.0
        %v887 = vadd.f32 %v823, 1.0
        %v888 = vadd.f32 %v824, 1.0
        %v889 = vadd.f32 %v825, 1.0
        %v890 = vadd.f32 %v826, 1.0
        %v891 = vadd.f32 %v827, 1.0
        %v892 = vadd.f32 %v828, 1.0
        %v893 = vadd.f32 %v829, 1.0
        %v894 = vadd.f32 %v830, 1.0
        %v895 = vadd.f32 %v831, 1.0
        %v896 = vadd.f32 %v832, 1.0
        %v897 = vadd.f32 %v833, 1.0
        %v898 = vadd.f32 %v834, 1.0
        %v899 = vadd.f32 %v835, 1.0
        %v900 = vadd.f32 %v836, 1.0
        %v901 = vadd.f32 %v837, 1.0
        %v902 = vadd.f32 %v838, 1.0
        %v903 = vadd.f32 %v839, 1.0
        %v904 = vadd.f32 %v840, 1.0
        %v905 = vadd.f32 %v841, 1.0
        %v906 = vadd.f32 %v842, 1.0
        %v907 = vadd.f32 %v843, 1.0
        %v908 = vadd.f32 %v844, 1.0
        %v909 = vadd.f32 %v845, 1.0
        %v910 = vadd.f32 %v846, 1.0
        %v911 = vadd.f32 %v847, 1.0
        %v912 = vadd.f32 %v848, 1.0
        %v913 = vadd.f32 %v849, 1.0
        %v914 = vadd.f32 %v850, 1.0
        %v915 = vadd.f32 %v851, 1.0
        %v916 = vadd.f32 %v852, 1.0
        %v917 = vadd.f32 %v853, 1.0
        %v918 = vadd.f32 %v854, 1.0
        %v919 = vadd.f32 %v855, 1.0
        %v920 = vadd.f32 %v856, 1.0
        %v921 = vadd.f32 %v857, 1.0
        %v922 = vadd.f32 %v858, 1.0
        %v923 = vadd.f32 %v859, 1.0
        %v924 = vadd.f32 %v860, 1.0
        %v925 = vadd.f32 %v861, 1.0
        %v926 = vadd.f32 %v862, 1.0
        %v927 = vadd.f32 %v863, 1.0
        %v928 = vadd.f32 %v864, 1.0
        %v929 = vadd.f32 %v865, 1.0
        %v930 = vadd.f32 %v866, 1.0
        %v931 = vmul.f32 %v867, %v429
        %v932 = vmul.f32 %v868, %v430
        %v933 = vmul.f32 %v869, %v431
        %v934 = vmul.f32 %v870, %v432
        %v935 = vmul.f32 %v871, %v429
        %v936 = vmul.f32 %v872, %v430
        %v937 = vmul.f32 %v873, %v431
        %v938 = vmul.f32 %v874, %v432
        %v939 = vmul.f32 %v875, %v429
        %v940 = vmul.f32 %v876, %v430
        %v941 = vmul.f32 %v877, %v431
        %v942 = vmul.f32 %v878, %v432
        %v943 = vmul.f32 %v879, %v429
        %v944 = vmul.f32 %v880, %v430
        %v945 = vmul.f32 %v881, %v431
        %v946 = vmul.f32 %v882, %v432
        %v947 = vmul.f32 %v883, %v429
        %v948 = vmul.f32 %v884, %v430
        %v949 = vmul.f32 %v885, %v431
        %v950 = vmul.f32 %v886, %v432
        %v951 = vmul.f32 %v887, %v429
        %v952 = vmul.f32 %v888, %v430
        %v953 = vmul.f32 %v889, %v431
        %v954 = vmul.f32 %v890, %v432
        %v955 = vmul.f32 %v891, %v429
        %v956 = vmul.f32 %v892, %v430
        %v957 = vmul.f32 %v893, %v431
        %v958 = vmul.f32 %v894, %v432
        %v959 = vmul.f32 %v895, %v429
        %v960 = vmul.f32 %v896, %v430
        %v961 = vmul.f32 %v897, %v431
        %v962 = vmul.f32 %v898, %v432
        %v963 = vmul.f32 %v899, %v429
        %v964 = vmul.f32 %v900, %v430
        %v965 = vmul.f32 %v901, %v431
        %v966 = vmul.f32 %v902, %v432
        %v967 = vmul.f32 %v903, %v429
        %v968 = vmul.f32 %v904, %v430
        %v969 = vmul.f32 %v905, %v431
        %v970 = vmul.f32 %v906, %v432
        %v971 = vmul.f32 %v907, %v429
        %v972 = vmul.f32 %v908, %v430
        %v973 = vmul.f32 %v909, %v431
        %v974 = vmul.f32 %v910, %v432
        %v975 = vmul.f32 %v911, %v429
        %v976 = vmul.f32 %v912, %v430
        %v977 = vmul.f32 %v913, %v431
        %v978 = vmul.f32 %v914, %v432
        %v979 = vmul.f32 %v915, %v429
        %v980 = vmul.f32 %v916, %v430
        %v981 = vmul.f32 %v917, %v431
        %v982 = vmul.f32 %v918, %v432
        %v983 = vmul.f32 %v919, %v429
        %v984 = vmul.f32 %v920, %v430
        %v985 = vmul.f32 %v921, %v431
        %v986 = vmul.f32 %v922, %v432
        %v987 = vmul.f32 %v923, %v429
        %v988 = vmul.f32 %v924, %v430
        %v989 = vmul.f32 %v925, %v431
        %v990 = vmul.f32 %v926, %v432
        %v991 = vmul.f32 %v927, %v429
        %v992 = vmul.f32 %v928, %v430
        %v993 = vmul.f32 %v929, %v431
        %v994 = vmul.f32 %v930, %v432
        %v997 = vcombine.high %v433, %v433
        %v999 = vunpack.c.l.s4 1966171168
        %v1000 = vunpack.c.0.s8 %v999
        %v1001 = vlaneseq
        %v1002 = vshrl.u32 %v1001, 7
        %v1003 = vsub.s32 %v1000, %v1002
        %v1004 = vrot.slane %v433, %v1003
        %v1006 = vunpack.c.l.s4 1966171168
        %v1007 = vunpack.c.0.s8 %v1006
        %v1008 = vlaneseq
        %v1009 = vshrl.u32 %v1008, 7
        %v1010 = vsub.s32 %v1007, %v1009
        %v1011 = vrot.slane %v997, %v1010
        %v1012 = vcombine.high %v1004, %v1004
        %v1013 = vcombine.high %v1011, %v1011
        %v1015 = vunpack.c.l.s4 1966171168
        %v1016 = vunpack.c.0.s8 %v1015
        %v1017 = vlaneseq
        %v1018 = vshrl.u32 %v1017, 7
        %v1019 = vsub.s32 %v1016, %v1018
        %v1020 = vrot.slane %v1004, %v1019
        %v1022 = vunpack.c.l.s4 1966171168
        %v1023 = vunpack.c.0.s8 %v1022
        %v1024 = vlaneseq
        %v1025 = vshrl.u32 %v1024, 7
        %v1026 = vsub.s32 %v1023, %v1025
        %v1027 = vrot.slane %v1011, %v1026
        %v1029 = vunpack.c.l.s4 1966171168
        %v1030 = vunpack.c.0.s8 %v1029
        %v1031 = vlaneseq
        %v1032 = vshrl.u32 %v1031, 7
        %v1033 = vsub.s32 %v1030, %v1032
        %v1034 = vrot.slane %v1012, %v1033
        %v1036 = vunpack.c.l.s4 1966171168
        %v1037 = vunpack.c.0.s8 %v1036
        %v1038 = vlaneseq
        %v1039 = vshrl.u32 %v1038, 7
        %v1040 = vsub.s32 %v1037, %v1039
        %v1041 = vrot.slane %v1013, %v1040
        %v1042 = vcombine.high %v1020, %v1020
        %v1043 = vcombine.high %v1027, %v1027
        %v1044 = vcombine.high %v1034, %v1034
        %v1045 = vcombine.high %v1041, %v1041
        %v1046 = vcombine.high %v434, %v434
        %v1048 = vunpack.c.l.s4 1966171168
        %v1049 = vunpack.c.0.s8 %v1048
        %v1050 = vlaneseq
        %v1051 = vshrl.u32 %v1050, 7
        %v1052 = vsub.s32 %v1049, %v1051
        %v1053 = vrot.slane %v434, %v1052
        %v1055 = vunpack.c.l.s4 1966171168
        %v1056 = vunpack.c.0.s8 %v1055
        %v1057 = vlaneseq
        %v1058 = vshrl.u32 %v1057, 7
        %v1059 = vsub.s32 %v1056, %v1058
        %v1060 = vrot.slane %v1046, %v1059
        %v1061 = vcombine.high %v1053, %v1053
        %v1062 = vcombine.high %v1060, %v1060
        %v1064 = vunpack.c.l.s4 1966171168
        %v1065 = vunpack.c.0.s8 %v1064
        %v1066 = vlaneseq
        %v1067 = vshrl.u32 %v1066, 7
        %v1068 = vsub.s32 %v1065, %v1067
        %v1069 = vrot.slane %v1053, %v1068
        %v1071 = vunpack.c.l.s4 1966171168
        %v1072 = vunpack.c.0.s8 %v1071
        %v1073 = vlaneseq
        %v1074 = vshrl.u32 %v1073, 7
        %v1075 = vsub.s32 %v1072, %v1074
        %v1076 = vrot.slane %v1060, %v1075
        %v1078 = vunpack.c.l.s4 1966171168
        %v1079 = vunpack.c.0.s8 %v1078
        %v1080 = vlaneseq
        %v1081 = vshrl.u32 %v1080, 7
        %v1082 = vsub.s32 %v1079, %v1081
        %v1083 = vrot.slane %v1061, %v1082
        %v1085 = vunpack.c.l.s4 1966171168
        %v1086 = vunpack.c.0.s8 %v1085
        %v1087 = vlaneseq
        %v1088 = vshrl.u32 %v1087, 7
        %v1089 = vsub.s32 %v1086, %v1088
        %v1090 = vrot.slane %v1062, %v1089
        %v1091 = vcombine.high %v1069, %v1069
        %v1092 = vcombine.high %v1076, %v1076
        %v1093 = vcombine.high %v1083, %v1083
        %v1094 = vcombine.high %v1090, %v1090
        %v1095 = vlaneseq
        %v1096 = vshrl.u32 %v1095, 7
        %v1097 = vsub.s32 0, %v1096
        %v1098 = vrot.slane %v1020, %v1097
        %v1099 = vlaneseq
        %v1100 = vshrl.u32 %v1099, 7
        %v1101 = vsub.s32 0, %v1100
        %v1102 = vrot.slane %v1034, %v1101
        %v1103 = vlaneseq
        %v1104 = vshrl.u32 %v1103, 7
        %v1105 = vsub.s32 0, %v1104
        %v1106 = vrot.slane %v1042, %v1105
        %v1107 = vlaneseq
        %v1108 = vshrl.u32 %v1107, 7
        %v1109 = vsub.s32 0, %v1108
        %v1110 = vrot.slane %v1044, %v1109
        %v1111 = vlaneseq
        %v1112 = vshrl.u32 %v1111, 7
        %v1113 = vsub.s32 0, %v1112
        %v1114 = vrot.slane %v1027, %v1113
        %v1115 = vlaneseq
        %v1116 = vshrl.u32 %v1115, 7
        %v1117 = vsub.s32 0, %v1116
        %v1118 = vrot.slane %v1041, %v1117
        %v1119 = vlaneseq
        %v1120 = vshrl.u32 %v1119, 7
        %v1121 = vsub.s32 0, %v1120
        %v1122 = vrot.slane %v1043, %v1121
        %v1123 = vlaneseq
        %v1124 = vshrl.u32 %v1123, 7
        %v1125 = vsub.s32 0, %v1124
        %v1126 = vrot.slane %v1045, %v1125
        %v1127 = vlaneseq
        %v1128 = vshrl.u32 %v1127, 7
        %v1129 = vsub.s32 0, %v1128
        %v1130 = vrot.slane %v1069, %v1129
        %v1131 = vlaneseq
        %v1132 = vshrl.u32 %v1131, 7
        %v1133 = vsub.s32 0, %v1132
        %v1134 = vrot.slane %v1083, %v1133
        %v1135 = vlaneseq
        %v1136 = vshrl.u32 %v1135, 7
        %v1137 = vsub.s32 0, %v1136
        %v1138 = vrot.slane %v1091, %v1137
        %v1139 = vlaneseq
        %v1140 = vshrl.u32 %v1139, 7
        %v1141 = vsub.s32 0, %v1140
        %v1142 = vrot.slane %v1093, %v1141
        %v1143 = vlaneseq
        %v1144 = vshrl.u32 %v1143, 7
        %v1145 = vsub.s32 0, %v1144
        %v1146 = vrot.slane %v1076, %v1145
        %v1147 = vlaneseq
        %v1148 = vshrl.u32 %v1147, 7
        %v1149 = vsub.s32 0, %v1148
        %v1150 = vrot.slane %v1090, %v1149
        %v1151 = vlaneseq
        %v1152 = vshrl.u32 %v1151, 7
        %v1153 = vsub.s32 0, %v1152
        %v1154 = vrot.slane %v1092, %v1153
        %v1155 = vlaneseq
        %v1156 = vshrl.u32 %v1155, 7
        %v1157 = vsub.s32 0, %v1156
        %v1158 = vrot.slane %v1094, %v1157
        %v1175 = vmul.f32 %v931, %v1098
        %v1176 = vmul.f32 %v932, %v1098
        %v1177 = vmul.f32 %v933, %v1098
        %v1178 = vmul.f32 %v934, %v1098
        %v1179 = vmul.f32 %v935, %v1102
        %v1180 = vmul.f32 %v936, %v1102
        %v1181 = vmul.f32 %v937, %v1102
        %v1182 = vmul.f32 %v938, %v1102
        %v1183 = vmul.f32 %v939, %v1106
        %v1184 = vmul.f32 %v940, %v1106
        %v1185 = vmul.f32 %v941, %v1106
        %v1186 = vmul.f32 %v942, %v1106
        %v1187 = vmul.f32 %v943, %v1110
        %v1188 = vmul.f32 %v944, %v1110
        %v1189 = vmul.f32 %v945, %v1110
        %v1190 = vmul.f32 %v946, %v1110
        %v1191 = vmul.f32 %v947, %v1114
        %v1192 = vmul.f32 %v948, %v1114
        %v1193 = vmul.f32 %v949, %v1114
        %v1194 = vmul.f32 %v950, %v1114
        %v1195 = vmul.f32 %v951, %v1118
        %v1196 = vmul.f32 %v952, %v1118
        %v1197 = vmul.f32 %v953, %v1118
        %v1198 = vmul.f32 %v954, %v1118
        %v1199 = vmul.f32 %v955, %v1122
        %v1200 = vmul.f32 %v956, %v1122
        %v1201 = vmul.f32 %v957, %v1122
        %v1202 = vmul.f32 %v958, %v1122
        %v1203 = vmul.f32 %v959, %v1126
        %v1204 = vmul.f32 %v960, %v1126
        %v1205 = vmul.f32 %v961, %v1126
        %v1206 = vmul.f32 %v962, %v1126
        %v1207 = vmul.f32 %v963, %v1130
        %v1208 = vmul.f32 %v964, %v1130
        %v1209 = vmul.f32 %v965, %v1130
        %v1210 = vmul.f32 %v966, %v1130
        %v1211 = vmul.f32 %v967, %v1134
        %v1212 = vmul.f32 %v968, %v1134
        %v1213 = vmul.f32 %v969, %v1134
        %v1214 = vmul.f32 %v970, %v1134
        %v1215 = vmul.f32 %v971, %v1138
        %v1216 = vmul.f32 %v972, %v1138
        %v1217 = vmul.f32 %v973, %v1138
        %v1218 = vmul.f32 %v974, %v1138
        %v1219 = vmul.f32 %v975, %v1142
        %v1220 = vmul.f32 %v976, %v1142
        %v1221 = vmul.f32 %v977, %v1142
        %v1222 = vmul.f32 %v978, %v1142
        %v1223 = vmul.f32 %v979, %v1146
        %v1224 = vmul.f32 %v980, %v1146
        %v1225 = vmul.f32 %v981, %v1146
        %v1226 = vmul.f32 %v982, %v1146
        %v1227 = vmul.f32 %v983, %v1150
        %v1228 = vmul.f32 %v984, %v1150
        %v1229 = vmul.f32 %v985, %v1150
        %v1230 = vmul.f32 %v986, %v1150
        %v1231 = vmul.f32 %v987, %v1154
        %v1232 = vmul.f32 %v988, %v1154
        %v1233 = vmul.f32 %v989, %v1154
        %v1234 = vmul.f32 %v990, %v1154
        %v1235 = vmul.f32 %v991, %v1158
        %v1236 = vmul.f32 %v992, %v1158
        %v1237 = vmul.f32 %v993, %v1158
        %v1238 = vmul.f32 %v994, %v1158
        %v1239 = vld [vmem:[#allocation2] sm:$0xff]
        %v1240 = vld [vmem:[#allocation2 + $0x8] sm:$0xff]
        %vm1241 = vcmask 130048
        %v1242 = vsel %vm1241, %v1175, 0.0
        %1243 = vadd.xlane.f32.xlu0 %v1242
        %v1244 = vpop.xlane.xlu0 %1243
        %v1245 = vsel %vm1241, %v1176, 0.0
        %1246 = vadd.xlane.f32.xlu0 %v1245
        %v1247 = vpop.xlane.xlu0 %1246
        %v1248 = vsel %vm1241, %v1177, 0.0
        %1249 = vadd.xlane.f32.xlu0 %v1248
        %v1250 = vpop.xlane.xlu0 %1249
        %v1251 = vsel %vm1241, %v1178, 0.0
        %1252 = vadd.xlane.f32.xlu0 %v1251
        %v1253 = vpop.xlane.xlu0 %1252
        %v1254 = vsel %vm1241, %v1179, 0.0
        %1255 = vadd.xlane.f32.xlu0 %v1254
        %v1256 = vpop.xlane.xlu0 %1255
        %v1257 = vsel %vm1241, %v1180, 0.0
        %1258 = vadd.xlane.f32.xlu0 %v1257
        %v1259 = vpop.xlane.xlu0 %1258
        %v1260 = vsel %vm1241, %v1181, 0.0
        %1261 = vadd.xlane.f32.xlu0 %v1260
        %v1262 = vpop.xlane.xlu0 %1261
        %v1263 = vsel %vm1241, %v1182, 0.0
        %1264 = vadd.xlane.f32.xlu0 %v1263
        %v1265 = vpop.xlane.xlu0 %1264
        %v1266 = vsel %vm1241, %v1183, 0.0
        %1267 = vadd.xlane.f32.xlu0 %v1266
        %v1268 = vpop.xlane.xlu0 %1267
        %v1269 = vsel %vm1241, %v1184, 0.0
        %1270 = vadd.xlane.f32.xlu0 %v1269
        %v1271 = vpop.xlane.xlu0 %1270
        %v1272 = vsel %vm1241, %v1185, 0.0
        %1273 = vadd.xlane.f32.xlu0 %v1272
        %v1274 = vpop.xlane.xlu0 %1273
        %v1275 = vsel %vm1241, %v1186, 0.0
        %1276 = vadd.xlane.f32.xlu0 %v1275
        %v1277 = vpop.xlane.xlu0 %1276
        %v1278 = vsel %vm1241, %v1187, 0.0
        %1279 = vadd.xlane.f32.xlu0 %v1278
        %v1280 = vpop.xlane.xlu0 %1279
        %v1281 = vsel %vm1241, %v1188, 0.0
        %1282 = vadd.xlane.f32.xlu0 %v1281
        %v1283 = vpop.xlane.xlu0 %1282
        %v1284 = vsel %vm1241, %v1189, 0.0
        %1285 = vadd.xlane.f32.xlu0 %v1284
        %v1286 = vpop.xlane.xlu0 %1285
        %v1287 = vsel %vm1241, %v1190, 0.0
        %1288 = vadd.xlane.f32.xlu0 %v1287
        %v1289 = vpop.xlane.xlu0 %1288
        %v1290 = vsel %vm1241, %v1191, 0.0
        %1291 = vadd.xlane.f32.xlu0 %v1290
        %v1292 = vpop.xlane.xlu0 %1291
        %v1293 = vsel %vm1241, %v1192, 0.0
        %1294 = vadd.xlane.f32.xlu0 %v1293
        %v1295 = vpop.xlane.xlu0 %1294
        %v1296 = vsel %vm1241, %v1193, 0.0
        %1297 = vadd.xlane.f32.xlu0 %v1296
        %v1298 = vpop.xlane.xlu0 %1297
        %v1299 = vsel %vm1241, %v1194, 0.0
        %1300 = vadd.xlane.f32.xlu0 %v1299
        %v1301 = vpop.xlane.xlu0 %1300
        %v1302 = vsel %vm1241, %v1195, 0.0
        %1303 = vadd.xlane.f32.xlu0 %v1302
        %v1304 = vpop.xlane.xlu0 %1303
        %v1305 = vsel %vm1241, %v1196, 0.0
        %1306 = vadd.xlane.f32.xlu0 %v1305
        %v1307 = vpop.xlane.xlu0 %1306
        %v1308 = vsel %vm1241, %v1197, 0.0
        %1309 = vadd.xlane.f32.xlu0 %v1308
        %v1310 = vpop.xlane.xlu0 %1309
        %v1311 = vsel %vm1241, %v1198, 0.0
        %1312 = vadd.xlane.f32.xlu0 %v1311
        %v1313 = vpop.xlane.xlu0 %1312
        %v1314 = vsel %vm1241, %v1199, 0.0
        %1315 = vadd.xlane.f32.xlu0 %v1314
        %v1316 = vpop.xlane.xlu0 %1315
        %v1317 = vsel %vm1241, %v1200, 0.0
        %1318 = vadd.xlane.f32.xlu0 %v1317
        %v1319 = vpop.xlane.xlu0 %1318
        %v1320 = vsel %vm1241, %v1201, 0.0
        %1321 = vadd.xlane.f32.xlu0 %v1320
        %v1322 = vpop.xlane.xlu0 %1321
        %v1323 = vsel %vm1241, %v1202, 0.0
        %1324 = vadd.xlane.f32.xlu0 %v1323
        %v1325 = vpop.xlane.xlu0 %1324
        %v1326 = vsel %vm1241, %v1203, 0.0
        %1327 = vadd.xlane.f32.xlu0 %v1326
        %v1328 = vpop.xlane.xlu0 %1327
        %v1329 = vsel %vm1241, %v1204, 0.0
        %1330 = vadd.xlane.f32.xlu0 %v1329
        %v1331 = vpop.xlane.xlu0 %1330
        %v1332 = vsel %vm1241, %v1205, 0.0
        %1333 = vadd.xlane.f32.xlu0 %v1332
        %v1334 = vpop.xlane.xlu0 %1333
        %v1335 = vsel %vm1241, %v1206, 0.0
        %1336 = vadd.xlane.f32.xlu0 %v1335
        %v1337 = vpop.xlane.xlu0 %1336
        %v1338 = vsel %vm1241, %v1207, 0.0
        %1339 = vadd.xlane.f32.xlu0 %v1338
        %v1340 = vpop.xlane.xlu0 %1339
        %v1341 = vsel %vm1241, %v1208, 0.0
        %1342 = vadd.xlane.f32.xlu0 %v1341
        %v1343 = vpop.xlane.xlu0 %1342
        %v1344 = vsel %vm1241, %v1209, 0.0
        %1345 = vadd.xlane.f32.xlu0 %v1344
        %v1346 = vpop.xlane.xlu0 %1345
        %v1347 = vsel %vm1241, %v1210, 0.0
        %1348 = vadd.xlane.f32.xlu0 %v1347
        %v1349 = vpop.xlane.xlu0 %1348
        %v1350 = vsel %vm1241, %v1211, 0.0
        %1351 = vadd.xlane.f32.xlu0 %v1350
        %v1352 = vpop.xlane.xlu0 %1351
        %v1353 = vsel %vm1241, %v1212, 0.0
        %1354 = vadd.xlane.f32.xlu0 %v1353
        %v1355 = vpop.xlane.xlu0 %1354
        %v1356 = vsel %vm1241, %v1213, 0.0
        %1357 = vadd.xlane.f32.xlu0 %v1356
        %v1358 = vpop.xlane.xlu0 %1357
        %v1359 = vsel %vm1241, %v1214, 0.0
        %1360 = vadd.xlane.f32.xlu0 %v1359
        %v1361 = vpop.xlane.xlu0 %1360
        %v1362 = vsel %vm1241, %v1215, 0.0
        %1363 = vadd.xlane.f32.xlu0 %v1362
        %v1364 = vpop.xlane.xlu0 %1363
        %v1365 = vsel %vm1241, %v1216, 0.0
        %1366 = vadd.xlane.f32.xlu0 %v1365
        %v1367 = vpop.xlane.xlu0 %1366
        %v1368 = vsel %vm1241, %v1217, 0.0
        %1369 = vadd.xlane.f32.xlu0 %v1368
        %v1370 = vpop.xlane.xlu0 %1369
        %v1371 = vsel %vm1241, %v1218, 0.0
        %1372 = vadd.xlane.f32.xlu0 %v1371
        %v1373 = vpop.xlane.xlu0 %1372
        %v1374 = vsel %vm1241, %v1219, 0.0
        %1375 = vadd.xlane.f32.xlu0 %v1374
        %v1376 = vpop.xlane.xlu0 %1375
        %v1377 = vsel %vm1241, %v1220, 0.0
        %1378 = vadd.xlane.f32.xlu0 %v1377
        %v1379 = vpop.xlane.xlu0 %1378
        %v1380 = vsel %vm1241, %v1221, 0.0
        %1381 = vadd.xlane.f32.xlu0 %v1380
        %v1382 = vpop.xlane.xlu0 %1381
        %v1383 = vsel %vm1241, %v1222, 0.0
        %1384 = vadd.xlane.f32.xlu0 %v1383
        %v1385 = vpop.xlane.xlu0 %1384
        %v1386 = vsel %vm1241, %v1223, 0.0
        %1387 = vadd.xlane.f32.xlu0 %v1386
        %v1388 = vpop.xlane.xlu0 %1387
        %v1389 = vsel %vm1241, %v1224, 0.0
        %1390 = vadd.xlane.f32.xlu0 %v1389
        %v1391 = vpop.xlane.xlu0 %1390
        %v1392 = vsel %vm1241, %v1225, 0.0
        %1393 = vadd.xlane.f32.xlu0 %v1392
        %v1394 = vpop.xlane.xlu0 %1393
        %v1395 = vsel %vm1241, %v1226, 0.0
        %1396 = vadd.xlane.f32.xlu0 %v1395
        %v1397 = vpop.xlane.xlu0 %1396
        %v1398 = vsel %vm1241, %v1227, 0.0
        %1399 = vadd.xlane.f32.xlu0 %v1398
        %v1400 = vpop.xlane.xlu0 %1399
        %v1401 = vsel %vm1241, %v1228, 0.0
        %1402 = vadd.xlane.f32.xlu0 %v1401
        %v1403 = vpop.xlane.xlu0 %1402
        %v1404 = vsel %vm1241, %v1229, 0.0
        %1405 = vadd.xlane.f32.xlu0 %v1404
        %v1406 = vpop.xlane.xlu0 %1405
        %v1407 = vsel %vm1241, %v1230, 0.0
        %1408 = vadd.xlane.f32.xlu0 %v1407
        %v1409 = vpop.xlane.xlu0 %1408
        %v1410 = vsel %vm1241, %v1231, 0.0
        %1411 = vadd.xlane.f32.xlu0 %v1410
        %v1412 = vpop.xlane.xlu0 %1411
        %v1413 = vsel %vm1241, %v1232, 0.0
        %1414 = vadd.xlane.f32.xlu0 %v1413
        %v1415 = vpop.xlane.xlu0 %1414
        %v1416 = vsel %vm1241, %v1233, 0.0
        %1417 = vadd.xlane.f32.xlu0 %v1416
        %v1418 = vpop.xlane.xlu0 %1417
        %v1419 = vsel %vm1241, %v1234, 0.0
        %1420 = vadd.xlane.f32.xlu0 %v1419
        %v1421 = vpop.xlane.xlu0 %1420
        %v1422 = vsel %vm1241, %v1235, 0.0
        %1423 = vadd.xlane.f32.xlu0 %v1422
        %v1424 = vpop.xlane.xlu0 %1423
        %v1425 = vsel %vm1241, %v1236, 0.0
        %1426 = vadd.xlane.f32.xlu0 %v1425
        %v1427 = vpop.xlane.xlu0 %1426
        %v1428 = vsel %vm1241, %v1237, 0.0
        %1429 = vadd.xlane.f32.xlu0 %v1428
        %v1430 = vpop.xlane.xlu0 %1429
        %v1431 = vsel %vm1241, %v1238, 0.0
        %1432 = vadd.xlane.f32.xlu0 %v1431
        %v1433 = vpop.xlane.xlu0 %1432
        %v1498 = vlaneseq
        %v1499 = vand.u32 %v1498, 127
        %v1500 = vlaneseq
        %v1501 = vshrl.u32 %v1500, 7
        %v1502 = vsub.s32 %v1499, %v1501
        %v1503 = vrot.slane %v1244, %v1502
        %v1504 = vadd.s32 %v1499, 4294967288
        %v1505 = vlaneseq
        %v1506 = vshrl.u32 %v1505, 7
        %v1507 = vsub.s32 %v1504, %v1506
        %v1508 = vrot.slane %v1247, %v1507
        %vm1509 = vcmask 130112
        %v1510 = vsel %vm1509, %v1508, %v1503
        %v1511 = vadd.s32 %v1499, 4294967280
        %v1512 = vlaneseq
        %v1513 = vshrl.u32 %v1512, 7
        %v1514 = vsub.s32 %v1511, %v1513
        %v1515 = vrot.slane %v1250, %v1514
        %vm1516 = vcmask 195712
        %v1517 = vsel %vm1516, %v1515, %v1510
        %v1518 = vadd.s32 %v1499, 4294967272
        %v1519 = vlaneseq
        %v1520 = vshrl.u32 %v1519, 7
        %v1521 = vsub.s32 %v1518, %v1520
        %v1522 = vrot.slane %v1253, %v1521
        %vm1523 = vcmask 261312
        %v1524 = vsel %vm1523, %v1522, %v1517
        %v1525 = vlaneseq
        %v1526 = vshrl.u32 %v1525, 7
        %v1527 = vsub.s32 %v1499, %v1526
        %v1528 = vrot.slane %v1256, %v1527
        %v1529 = vlaneseq
        %v1530 = vshrl.u32 %v1529, 7
        %v1531 = vsub.s32 %v1504, %v1530
        %v1532 = vrot.slane %v1259, %v1531
        %v1533 = vsel %vm1509, %v1532, %v1528
        %v1534 = vlaneseq
        %v1535 = vshrl.u32 %v1534, 7
        %v1536 = vsub.s32 %v1511, %v1535
        %v1537 = vrot.slane %v1262, %v1536
        %v1538 = vsel %vm1516, %v1537, %v1533
        %v1539 = vlaneseq
        %v1540 = vshrl.u32 %v1539, 7
        %v1541 = vsub.s32 %v1518, %v1540
        %v1542 = vrot.slane %v1265, %v1541
        %v1543 = vsel %vm1523, %v1542, %v1538
        %v1544 = vlaneseq
        %v1545 = vshrl.u32 %v1544, 7
        %v1546 = vsub.s32 %v1499, %v1545
        %v1547 = vrot.slane %v1268, %v1546
        %v1548 = vlaneseq
        %v1549 = vshrl.u32 %v1548, 7
        %v1550 = vsub.s32 %v1504, %v1549
        %v1551 = vrot.slane %v1271, %v1550
        %v1552 = vsel %vm1509, %v1551, %v1547
        %v1553 = vlaneseq
        %v1554 = vshrl.u32 %v1553, 7
        %v1555 = vsub.s32 %v1511, %v1554
        %v1556 = vrot.slane %v1274, %v1555
        %v1557 = vsel %vm1516, %v1556, %v1552
        %v1558 = vlaneseq
        %v1559 = vshrl.u32 %v1558, 7
        %v1560 = vsub.s32 %v1518, %v1559
        %v1561 = vrot.slane %v1277, %v1560
        %v1562 = vsel %vm1523, %v1561, %v1557
        %v1563 = vlaneseq
        %v1564 = vshrl.u32 %v1563, 7
        %v1565 = vsub.s32 %v1499, %v1564
        %v1566 = vrot.slane %v1280, %v1565
        %v1567 = vlaneseq
        %v1568 = vshrl.u32 %v1567, 7
        %v1569 = vsub.s32 %v1504, %v1568
        %v1570 = vrot.slane %v1283, %v1569
        %v1571 = vsel %vm1509, %v1570, %v1566
        %v1572 = vlaneseq
        %v1573 = vshrl.u32 %v1572, 7
        %v1574 = vsub.s32 %v1511, %v1573
        %v1575 = vrot.slane %v1286, %v1574
        %v1576 = vsel %vm1516, %v1575, %v1571
        %v1577 = vlaneseq
        %v1578 = vshrl.u32 %v1577, 7
        %v1579 = vsub.s32 %v1518, %v1578
        %v1580 = vrot.slane %v1289, %v1579
        %v1581 = vsel %vm1523, %v1580, %v1576
        %v1582 = vlaneseq
        %v1583 = vshrl.u32 %v1582, 7
        %v1584 = vsub.s32 %v1499, %v1583
        %v1585 = vrot.slane %v1292, %v1584
        %v1586 = vlaneseq
        %v1587 = vshrl.u32 %v1586, 7
        %v1588 = vsub.s32 %v1504, %v1587
        %v1589 = vrot.slane %v1295, %v1588
        %v1590 = vsel %vm1509, %v1589, %v1585
        %v1591 = vlaneseq
        %v1592 = vshrl.u32 %v1591, 7
        %v1593 = vsub.s32 %v1511, %v1592
        %v1594 = vrot.slane %v1298, %v1593
        %v1595 = vsel %vm1516, %v1594, %v1590
        %v1596 = vlaneseq
        %v1597 = vshrl.u32 %v1596, 7
        %v1598 = vsub.s32 %v1518, %v1597
        %v1599 = vrot.slane %v1301, %v1598
        %v1600 = vsel %vm1523, %v1599, %v1595
        %v1601 = vlaneseq
        %v1602 = vshrl.u32 %v1601, 7
        %v1603 = vsub.s32 %v1499, %v1602
        %v1604 = vrot.slane %v1304, %v1603
        %v1605 = vlaneseq
        %v1606 = vshrl.u32 %v1605, 7
        %v1607 = vsub.s32 %v1504, %v1606
        %v1608 = vrot.slane %v1307, %v1607
        %v1609 = vsel %vm1509, %v1608, %v1604
        %v1610 = vlaneseq
        %v1611 = vshrl.u32 %v1610, 7
        %v1612 = vsub.s32 %v1511, %v1611
        %v1613 = vrot.slane %v1310, %v1612
        %v1614 = vsel %vm1516, %v1613, %v1609
        %v1615 = vlaneseq
        %v1616 = vshrl.u32 %v1615, 7
        %v1617 = vsub.s32 %v1518, %v1616
        %v1618 = vrot.slane %v1313, %v1617
        %v1619 = vsel %vm1523, %v1618, %v1614
        %v1620 = vlaneseq
        %v1621 = vshrl.u32 %v1620, 7
        %v1622 = vsub.s32 %v1499, %v1621
        %v1623 = vrot.slane %v1316, %v1622
        %v1624 = vlaneseq
        %v1625 = vshrl.u32 %v1624, 7
        %v1626 = vsub.s32 %v1504, %v1625
        %v1627 = vrot.slane %v1319, %v1626
        %v1628 = vsel %vm1509, %v1627, %v1623
        %v1629 = vlaneseq
        %v1630 = vshrl.u32 %v1629, 7
        %v1631 = vsub.s32 %v1511, %v1630
        %v1632 = vrot.slane %v1322, %v1631
        %v1633 = vsel %vm1516, %v1632, %v1628
        %v1634 = vlaneseq
        %v1635 = vshrl.u32 %v1634, 7
        %v1636 = vsub.s32 %v1518, %v1635
        %v1637 = vrot.slane %v1325, %v1636
        %v1638 = vsel %vm1523, %v1637, %v1633
        %v1639 = vlaneseq
        %v1640 = vshrl.u32 %v1639, 7
        %v1641 = vsub.s32 %v1499, %v1640
        %v1642 = vrot.slane %v1328, %v1641
        %v1643 = vlaneseq
        %v1644 = vshrl.u32 %v1643, 7
        %v1645 = vsub.s32 %v1504, %v1644
        %v1646 = vrot.slane %v1331, %v1645
        %v1647 = vsel %vm1509, %v1646, %v1642
        %v1648 = vlaneseq
        %v1649 = vshrl.u32 %v1648, 7
        %v1650 = vsub.s32 %v1511, %v1649
        %v1651 = vrot.slane %v1334, %v1650
        %v1652 = vsel %vm1516, %v1651, %v1647
        %v1653 = vlaneseq
        %v1654 = vshrl.u32 %v1653, 7
        %v1655 = vsub.s32 %v1518, %v1654
        %v1656 = vrot.slane %v1337, %v1655
        %v1657 = vsel %vm1523, %v1656, %v1652
        %v1658 = vlaneseq
        %v1659 = vshrl.u32 %v1658, 7
        %v1660 = vsub.s32 %v1499, %v1659
        %v1661 = vrot.slane %v1340, %v1660
        %v1662 = vlaneseq
        %v1663 = vshrl.u32 %v1662, 7
        %v1664 = vsub.s32 %v1504, %v1663
        %v1665 = vrot.slane %v1343, %v1664
        %v1666 = vsel %vm1509, %v1665, %v1661
        %v1667 = vlaneseq
        %v1668 = vshrl.u32 %v1667, 7
        %v1669 = vsub.s32 %v1511, %v1668
        %v1670 = vrot.slane %v1346, %v1669
        %v1671 = vsel %vm1516, %v1670, %v1666
        %v1672 = vlaneseq
        %v1673 = vshrl.u32 %v1672, 7
        %v1674 = vsub.s32 %v1518, %v1673
        %v1675 = vrot.slane %v1349, %v1674
        %v1676 = vsel %vm1523, %v1675, %v1671
        %v1677 = vlaneseq
        %v1678 = vshrl.u32 %v1677, 7
        %v1679 = vsub.s32 %v1499, %v1678
        %v1680 = vrot.slane %v1352, %v1679
        %v1681 = vlaneseq
        %v1682 = vshrl.u32 %v1681, 7
        %v1683 = vsub.s32 %v1504, %v1682
        %v1684 = vrot.slane %v1355, %v1683
        %v1685 = vsel %vm1509, %v1684, %v1680
        %v1686 = vlaneseq
        %v1687 = vshrl.u32 %v1686, 7
        %v1688 = vsub.s32 %v1511, %v1687
        %v1689 = vrot.slane %v1358, %v1688
        %v1690 = vsel %vm1516, %v1689, %v1685
        %v1691 = vlaneseq
        %v1692 = vshrl.u32 %v1691, 7
        %v1693 = vsub.s32 %v1518, %v1692
        %v1694 = vrot.slane %v1361, %v1693
        %v1695 = vsel %vm1523, %v1694, %v1690
        %v1696 = vlaneseq
        %v1697 = vshrl.u32 %v1696, 7
        %v1698 = vsub.s32 %v1499, %v1697
        %v1699 = vrot.slane %v1364, %v1698
        %v1700 = vlaneseq
        %v1701 = vshrl.u32 %v1700, 7
        %v1702 = vsub.s32 %v1504, %v1701
        %v1703 = vrot.slane %v1367, %v1702
        %v1704 = vsel %vm1509, %v1703, %v1699
        %v1705 = vlaneseq
        %v1706 = vshrl.u32 %v1705, 7
        %v1707 = vsub.s32 %v1511, %v1706
        %v1708 = vrot.slane %v1370, %v1707
        %v1709 = vsel %vm1516, %v1708, %v1704
        %v1710 = vlaneseq
        %v1711 = vshrl.u32 %v1710, 7
        %v1712 = vsub.s32 %v1518, %v1711
        %v1713 = vrot.slane %v1373, %v1712
        %v1714 = vsel %vm1523, %v1713, %v1709
        %v1715 = vlaneseq
        %v1716 = vshrl.u32 %v1715, 7
        %v1717 = vsub.s32 %v1499, %v1716
        %v1718 = vrot.slane %v1376, %v1717
        %v1719 = vlaneseq
        %v1720 = vshrl.u32 %v1719, 7
        %v1721 = vsub.s32 %v1504, %v1720
        %v1722 = vrot.slane %v1379, %v1721
        %v1723 = vsel %vm1509, %v1722, %v1718
        %v1724 = vlaneseq
        %v1725 = vshrl.u32 %v1724, 7
        %v1726 = vsub.s32 %v1511, %v1725
        %v1727 = vrot.slane %v1382, %v1726
        %v1728 = vsel %vm1516, %v1727, %v1723
        %v1729 = vlaneseq
        %v1730 = vshrl.u32 %v1729, 7
        %v1731 = vsub.s32 %v1518, %v1730
        %v1732 = vrot.slane %v1385, %v1731
        %v1733 = vsel %vm1523, %v1732, %v1728
        %v1734 = vlaneseq
        %v1735 = vshrl.u32 %v1734, 7
        %v1736 = vsub.s32 %v1499, %v1735
        %v1737 = vrot.slane %v1388, %v1736
        %v1738 = vlaneseq
        %v1739 = vshrl.u32 %v1738, 7
        %v1740 = vsub.s32 %v1504, %v1739
        %v1741 = vrot.slane %v1391, %v1740
        %v1742 = vsel %vm1509, %v1741, %v1737
        %v1743 = vlaneseq
        %v1744 = vshrl.u32 %v1743, 7
        %v1745 = vsub.s32 %v1511, %v1744
        %v1746 = vrot.slane %v1394, %v1745
        %v1747 = vsel %vm1516, %v1746, %v1742
        %v1748 = vlaneseq
        %v1749 = vshrl.u32 %v1748, 7
        %v1750 = vsub.s32 %v1518, %v1749
        %v1751 = vrot.slane %v1397, %v1750
        %v1752 = vsel %vm1523, %v1751, %v1747
        %v1753 = vlaneseq
        %v1754 = vshrl.u32 %v1753, 7
        %v1755 = vsub.s32 %v1499, %v1754
        %v1756 = vrot.slane %v1400, %v1755
        %v1757 = vlaneseq
        %v1758 = vshrl.u32 %v1757, 7
        %v1759 = vsub.s32 %v1504, %v1758
        %v1760 = vrot.slane %v1403, %v1759
        %v1761 = vsel %vm1509, %v1760, %v1756
        %v1762 = vlaneseq
        %v1763 = vshrl.u32 %v1762, 7
        %v1764 = vsub.s32 %v1511, %v1763
        %v1765 = vrot.slane %v1406, %v1764
        %v1766 = vsel %vm1516, %v1765, %v1761
        %v1767 = vlaneseq
        %v1768 = vshrl.u32 %v1767, 7
        %v1769 = vsub.s32 %v1518, %v1768
        %v1770 = vrot.slane %v1409, %v1769
        %v1771 = vsel %vm1523, %v1770, %v1766
        %v1772 = vlaneseq
        %v1773 = vshrl.u32 %v1772, 7
        %v1774 = vsub.s32 %v1499, %v1773
        %v1775 = vrot.slane %v1412, %v1774
        %v1776 = vlaneseq
        %v1777 = vshrl.u32 %v1776, 7
        %v1778 = vsub.s32 %v1504, %v1777
        %v1779 = vrot.slane %v1415, %v1778
        %v1780 = vsel %vm1509, %v1779, %v1775
        %v1781 = vlaneseq
        %v1782 = vshrl.u32 %v1781, 7
        %v1783 = vsub.s32 %v1511, %v1782
        %v1784 = vrot.slane %v1418, %v1783
        %v1785 = vsel %vm1516, %v1784, %v1780
        %v1786 = vlaneseq
        %v1787 = vshrl.u32 %v1786, 7
        %v1788 = vsub.s32 %v1518, %v1787
        %v1789 = vrot.slane %v1421, %v1788
        %v1790 = vsel %vm1523, %v1789, %v1785
        %v1791 = vlaneseq
        %v1792 = vshrl.u32 %v1791, 7
        %v1793 = vsub.s32 %v1499, %v1792
        %v1794 = vrot.slane %v1424, %v1793
        %v1795 = vlaneseq
        %v1796 = vshrl.u32 %v1795, 7
        %v1797 = vsub.s32 %v1504, %v1796
        %v1798 = vrot.slane %v1427, %v1797
        %v1799 = vsel %vm1509, %v1798, %v1794
        %v1800 = vlaneseq
        %v1801 = vshrl.u32 %v1800, 7
        %v1802 = vsub.s32 %v1511, %v1801
        %v1803 = vrot.slane %v1430, %v1802
        %v1804 = vsel %vm1516, %v1803, %v1799
        %v1805 = vlaneseq
        %v1806 = vshrl.u32 %v1805, 7
        %v1807 = vsub.s32 %v1518, %v1806
        %v1808 = vrot.slane %v1433, %v1807
        %v1809 = vsel %vm1523, %v1808, %v1804
        %vm1810 = vcmask 1041409
        %v1811 = vsel %vm1810, %v1543, %v1524
        %vm1812 = vcmask 1042434
        %v1813 = vsel %vm1812, %v1562, %v1811
        %vm1814 = vcmask 1043459
        %v1815 = vsel %vm1814, %v1581, %v1813
        %vm1816 = vcmask 1044484
        %v1817 = vsel %vm1816, %v1600, %v1815
        %vm1818 = vcmask 1045509
        %v1819 = vsel %vm1818, %v1619, %v1817
        %vm1820 = vcmask 1046534
        %v1821 = vsel %vm1820, %v1638, %v1819
        %vm1822 = vcmask 1047559
        %v1823 = vsel %vm1822, %v1657, %v1821
        %v1824 = vsel %vm1810, %v1695, %v1676
        %v1825 = vsel %vm1812, %v1714, %v1824
        %v1826 = vsel %vm1814, %v1733, %v1825
        %v1827 = vsel %vm1816, %v1752, %v1826
        %v1828 = vsel %vm1818, %v1771, %v1827
        %v1829 = vsel %vm1820, %v1790, %v1828
        %v1830 = vsel %vm1822, %v1809, %v1829
        %v1833 = vadd.f32 %v1239, %v1823
        %v1834 = vadd.f32 %v1240, %v1830
        %vm1835 = vcmask 261120
        %1836 = vst.msk [vmem:[#allocation2] sm:$0xff] %vm1835, %v1833
        %1837 = vst.msk [vmem:[#allocation2 + $0x8] sm:$0xff] %vm1835, %v1834
        // Predicated region
        $region45: #{gated_graph_conv.1} parent=39 // pred_check
          %p1838 = pneg %p406
        $region46: #{gated_graph_conv.1} parent=39 // pred_check_branch
          %1840 = sbr.rel (%p1838) target = $region48
        $region47: #{gated_graph_conv.1} parent=39 // pred_region
          %v1841 = vld [vmem:[%s364] sm:$0xff]
          %v1842 = vld [vmem:[%s364 + $0x8] sm:$0xff]
          %v1843 = vld [vmem:[#allocation2] sm:$0xff]
          %v1844 = vld [vmem:[#allocation2 + $0x8] sm:$0xff]
          %v1845 = vadd.f32 %v1841, %v1843
          %v1846 = vadd.f32 %v1842, %v1844
          %1847 = vst.msk [vmem:[%s355] sm:$0xff] %vm1835, %v1845
          %1848 = vst.msk [vmem:[%s355 + $0x8] sm:$0xff] %vm1835, %v1846
        $region48: #{gated_graph_conv.1} parent=39 // pred_fallthru
          _
        %s1849 = sand.u32 %s190, 1
        %s1850 = scalar_lea.sflag [#allocation4], %s1849
        %s1851 = sand.u32 %s190, 1
        %s1852 = smul.addr %s1851, 16
        %s1853 = scalar_lea.vmem [#allocation3], %s1852
        // Predicated region
        $region49: #{gated_graph_conv.1} parent=39 // pred_check
          %p1854 = pneg %p200
        $region50: #{gated_graph_conv.1} parent=39 // pred_check_branch
          %1856 = sbr.rel (%p1854) target = $region52
        $region51: #{gated_graph_conv.1} parent=39 // pred_region
          %s1857 = smul.u32 2, %s25
          %s1859 = ssub.s32 256, 256
          %1860 = vsyncadd %s1850, %s1859
          %s1861 = smul.addr %s24, 2
          %s1862 = sadd.s32 %s1857, %s1861
          %s1863 = smul.addr %s1862, 128
          %s1864 = scalar_lea.hbm %s5, %s1863
          %s1865 = sshll.u32 %s1853, 4
          %s1866 = int_to_ptr.vmem [resolvable:$true] %s1865
          %1871 = dma.vmem_to_hbm [thread:$0]  %s1866, 256, %s1864, %s1850, 128, 128, 8
        $region52: #{gated_graph_conv.1} parent=39 // pred_fallthru
          _
      $region40: #{gated_graph_conv.1} parent=5 // pred_fallthru
        _
      %p1872 = scmp.le.s32.totalorder 2, %s14
      // Predicated region
      $region53: #{gated_graph_conv.1} parent=5 // pred_check
        %p1873 = pneg %p1872
      $region54: #{gated_graph_conv.1} parent=5 // pred_check_branch
        %1875 = sbr.rel (%p1873) target = $region56
      $region55: #{gated_graph_conv.1} parent=5 // pred_region
        %s1876 = ssub.s32 %s14, 2
        // Predicated region
        $region57: #{gated_graph_conv.1} parent=55 // pred_check
          %p1877 = pneg %p206
        $region58: #{gated_graph_conv.1} parent=55 // pred_check_branch
          %1879 = sbr.rel (%p1877) target = $region60
        $region59: #{gated_graph_conv.1} parent=55 // pred_region
          %s1880 = sand.u32 %s191, 1
          %s1881 = scalar_lea.sflag [#allocation4], %s1880
          %s1882 = sand.u32 %s191, 1
          %s1883 = smul.addr %s1882, 16
          %s1884 = scalar_lea.vmem [#allocation3], %s1883
          %1885 = dma.done %s1881, 256
        $region60: #{gated_graph_conv.1} parent=55 // pred_fallthru
          _
      $region56: #{gated_graph_conv.1} parent=5 // pred_fallthru
        _
    $region6: #{gated_graph_conv.1} parent=1 // loop_footer
      %s18 = sadd.s32 1, %s14
    $region7: #{gated_graph_conv.1} parent=1 // loop_footer_branch
      %13 = sbr.rel target = $region3
    $region8: #{gated_graph_conv.1} parent=1 // loop_exit
      _
    %1886 = vsyncpa [#allocation4], 1
    %s1887 = scalar_lea.sflag [#allocation4], 1
    %1888 = vsyncpa %s1887, 1

</llo_original>
